<compile_context>
chip_gen: v5e
topology: v5e:2x2
jax: 0.10.0
libtpu: 0.0.40
codegen_flags: <defaults>
</compile_context>

<pallas_src>
import math
import functools

import jax
import jax.numpy as jnp
from jax.experimental import pallas as pl
from jax.experimental.pallas import tpu as pltpu


def _encoder_layer_kernel(n_heads, d_head, seq_len, eps, compute_dtype,
                          x_ref, mask_ref,
                          g1_ref, b1_ref, g2_ref, b2_ref,
                          wq_ref, bq_ref, wk_ref, bk_ref, wv_ref, bv_ref,
                          wo_ref, bo_ref, w1_ref, bf1_ref, w2_ref, bf2_ref,
                          o_ref):
    M, D = x_ref.shape            # M = b_block * seq_len rows
    S = seq_len
    Bb = M // S

    x = x_ref[...]                # (M, D) f32 residual stream

    # Additive attention bias, computed ONCE (hoisted out of the head loop).
    # nonzero mask -> attend (bias 0); zero mask -> bias -1e9.
    attn_bias = jnp.where(mask_ref[...] != 0, 0.0, -1e9).astype(jnp.float32)

    def layernorm(v, g, b):
        mu = jnp.mean(v, axis=-1, keepdims=True)
        var = jnp.mean((v - mu) ** 2, axis=-1, keepdims=True)
        # TODO(synk): custom LayerNorm eps unknown in reference repo; using 1e-6.
        return (v - mu) * jax.lax.rsqrt(var + eps) * g + b

    # ---- Multi-head attention (pre-norm) ----
    x1 = layernorm(x, g1_ref[...], b1_ref[...]).astype(compute_dtype)
    # Full-width projections over all M rows (good MXU M utilization).
    q = jnp.dot(x1, wq_ref[...], preferred_element_type=jnp.float32) + bq_ref[...]
    k = jnp.dot(x1, wk_ref[...], preferred_element_type=jnp.float32) + bk_ref[...]
    v = jnp.dot(x1, wv_ref[...], preferred_element_type=jnp.float32) + bv_ref[...]

    scale = 1.0 / math.sqrt(d_head)
    attn = jnp.zeros((M, D), jnp.float32)
    for h in range(n_heads):                       # static unroll; small H
        lo = h * d_head
        qh = q[:, lo:lo + d_head].reshape(Bb, S, d_head).astype(compute_dtype)
        kh = k[:, lo:lo + d_head].reshape(Bb, S, d_head).astype(compute_dtype)
        vh = v[:, lo:lo + d_head].reshape(Bb, S, d_head).astype(compute_dtype)
        s = jnp.einsum("bqd,bkd->bqk", qh, kh,
                       preferred_element_type=jnp.float32) * scale + attn_bias
        s = s - jnp.max(s, axis=-1, keepdims=True)
        p = jnp.exp(s)
        p = p * pl.reciprocal(jnp.sum(p, axis=-1, keepdims=True), approx=True)
        ctx = jnp.einsum("bqk,bkd->bqd", p.astype(compute_dtype), vh,
                         preferred_element_type=jnp.float32)      # (Bb, S, dh)
        # Project this head straight through its row-block of Wo and
        # accumulate -> no lane-axis concatenate of head outputs.
        attn += jnp.dot(ctx.reshape(M, d_head).astype(compute_dtype),
                        wo_ref[lo:lo + d_head, :],
                        preferred_element_type=jnp.float32)

    x = x + attn + bo_ref[...]    # dropout_1 == identity at inference

    # ---- Feed-forward network (pre-norm) ----
    x2 = layernorm(x, g2_ref[...], b2_ref[...]).astype(compute_dtype)
    h1 = jnp.maximum(
        jnp.dot(x2, w1_ref[...], preferred_element_type=jnp.float32) + bf1_ref[...],
        0.0).astype(compute_dtype)
    ffn = jnp.dot(h1, w2_ref[...], preferred_element_type=jnp.float32) + bf2_ref[...]

    o_ref[...] = (x + ffn).astype(o_ref.dtype)     # dropout_2 == identity


def _pick_b_block(B, S, target_rows=256, min_grid=2):
    """Largest divisor of B s.t. b_block*S <= target_rows while keeping the
    grid at least `min_grid` steps (keeps both v7x TCs / megacore busy)."""
    for d in range(B, 0, -1):
        if B % d == 0 and d * S <= target_rows and (B // d) >= min(min_grid, B):
            return d
    return 1


def encoder_layer(x, src_mask, params, *, n_heads, eps=1e-6,
                  compute_dtype=jnp.bfloat16, b_block=None):
    B, S, D = x.shape
    d_head = D // n_heads
    Dff = params["w1"].shape[1]

    if b_block is None:
        b_block = _pick_b_block(B, S)
    assert B % b_block == 0
    grid_b = B // b_block
    rows = b_block * S

    cd = compute_dtype
    # Ship matmul weights in the compute dtype (bf16 halves their DMA on
    # v6e/v7x); LayerNorm params and biases stay f32 (used in f32 epilogues).
    wq = params["wq"].astype(cd); wk = params["wk"].astype(cd)
    wv = params["wv"].astype(cd); wo = params["wo"].astype(cd)
    w1 = params["w1"].astype(cd); w2 = params["w2"].astype(cd)

    x2d = x.reshape(B * S, D)     # free host-side reshape: rows are the M dim

    def fullspec(shape):
        n = len(shape)
        return pl.BlockSpec(shape, lambda b, _n=n: (0,) * _n)

    grid_spec = pltpu.PrefetchScalarGridSpec(
        num_scalar_prefetch=0,
        grid=(grid_b,),
        in_specs=[
            pl.BlockSpec((rows, D), lambda b: (b, 0)),           # x rows
            pl.BlockSpec((b_block, S, S), lambda b: (b, 0, 0)),  # src_mask
            fullspec((1, D)), fullspec((1, D)),                  # gamma1, beta1
            fullspec((1, D)), fullspec((1, D)),                  # gamma2, beta2
            fullspec((D, D)), fullspec((1, D)),                  # Wq, bq
            fullspec((D, D)), fullspec((1, D)),                  # Wk, bk
            fullspec((D, D)), fullspec((1, D)),                  # Wv, bv
            fullspec((D, D)), fullspec((1, D)),                  # Wo, bo
            fullspec((D, Dff)), fullspec((1, Dff)),              # W1, b1
            fullspec((Dff, D)), fullspec((1, D)),                # W2, b2
        ],
        out_specs=pl.BlockSpec((rows, D), lambda b: (b, 0)),
    )

    # Advisory cost estimate so XLA schedules surrounding ops sensibly.
    flops = (2 * B * S * D * (4 * D)        # QKV + Wo projections
             + 4 * B * S * S * D            # scores + PV
             + 4 * B * S * D * Dff)         # FFN
    transcendentals = B * n_heads * S * S   # exp in softmax
    weight_arrs = [wq, wk, wv, wo, w1, w2]
    small_arrs = [params[k] for k in
                  ("g1", "b1", "g2", "b2", "bq", "bk", "bv", "bo", "bf1", "bf2")]
    param_bytes = sum(int(a.size) * a.dtype.itemsize for a in weight_arrs + small_arrs)
    bytes_accessed = (2 * int(x2d.size) * x2d.dtype.itemsize
                      + int(src_mask.size) * src_mask.dtype.itemsize
                      + grid_b * param_bytes)
    cost = pl.CostEstimate(flops=flops, transcendentals=transcendentals,
                           bytes_accessed=bytes_accessed)

    kernel = functools.partial(_encoder_layer_kernel, n_heads, d_head, S, eps, cd)
    out2d = pl.pallas_call(
        kernel,
        out_shape=jax.ShapeDtypeStruct((B * S, D), jnp.float32),
        grid_spec=grid_spec,
        compiler_params=pltpu.CompilerParams(
            dimension_semantics=("parallel",)),
        cost_estimate=cost,
    )(x2d, src_mask,
      params["g1"], params["b1"], params["g2"], params["b2"],
      wq, params["bq"], wk, params["bk"], wv, params["bv"],
      wo, params["bo"], w1, params["bf1"], w2, params["bf2"])
    return out2d.reshape(B, S, D)


def _reference(x, src_mask, params, *, n_heads, eps=1e-6):
    """Plain-JAX (f32) reference mirroring the PyTorch forward."""
    D = x.shape[-1]
    dh = D // n_heads

    def ln(v, g, b):
        mu = v.mean(-1, keepdims=True)
        var = ((v - mu) ** 2).mean(-1, keepdims=True)
        return (v - mu) / jnp.sqrt(var + eps) * g + b

    x1 = ln(x, params["g1"], params["b1"])
    q = x1 @ params["wq"] + params["bq"]
    k = x1 @ params["wk"] + params["bk"]
    v = x1 @ params["wv"] + params["bv"]
    B, S, _ = x.shape
    q = q.reshape(B, S, n_heads, dh).transpose(0, 2, 1, 3)
    k = k.reshape(B, S, n_heads, dh).transpose(0, 2, 1, 3)
    v = v.reshape(B, S, n_heads, dh).transpose(0, 2, 1, 3)
    scores = jnp.einsum("bhqd,bhkd->bhqk", q, k) / math.sqrt(dh)
    scores = jnp.where(src_mask[:, None, :, :] != 0, scores, -1e9)
    p = jax.nn.softmax(scores, axis=-1)
    attn = jnp.einsum("bhqk,bhkd->bhqd", p, v).transpose(0, 2, 1, 3).reshape(B, S, D)
    attn = attn @ params["wo"] + params["bo"]
    x = x + attn
    x2 = ln(x, params["g2"], params["b2"])
    ffn = jnp.maximum(x2 @ params["w1"] + params["bf1"], 0.0) @ params["w2"] + params["bf2"]
    return x + ffn


if __name__ == "__main__":
    B, S, D, H, Dff = 4, 8, 32, 4, 64

    key = jax.random.PRNGKey(0)
    keys = jax.random.split(key, 8)

    params = {
        "g1": jnp.ones((1, D), jnp.float32),
        "b1": jnp.zeros((1, D), jnp.float32),
        "g2": jnp.ones((1, D), jnp.float32),
        "b2": jnp.zeros((1, D), jnp.float32),
        "wq": 0.02 * jax.random.normal(keys[0], (D, D), jnp.float32),
        "bq": jnp.zeros((1, D), jnp.float32),
        "wk": 0.02 * jax.random.normal(keys[1], (D, D), jnp.float32),
        "bk": jnp.zeros((1, D), jnp.float32),
        "wv": 0.02 * jax.random.normal(keys[2], (D, D), jnp.float32),
        "bv": jnp.zeros((1, D), jnp.float32),
        "wo": 0.02 * jax.random.normal(keys[3], (D, D), jnp.float32),
        "bo": jnp.zeros((1, D), jnp.float32),
        "w1": 0.02 * jax.random.normal(keys[4], (D, Dff), jnp.float32),
        "bf1": jnp.zeros((1, Dff), jnp.float32),
        "w2": 0.02 * jax.random.normal(keys[5], (Dff, D), jnp.float32),
        "bf2": jnp.zeros((1, D), jnp.float32),
    }

    x = jax.random.normal(keys[6], (B, S, D), jnp.float32)
    # src_mask: nonzero = attend, 0 = masked.
    src_mask = jnp.ones((B, S, S), jnp.float32)
    src_mask = src_mask.at[1, :, S - 2:].set(0.0)
    src_mask = src_mask.at[3, :, S - 3:].set(0.0)

    ref = _reference(x, src_mask, params, n_heads=H)

    # f32 compute path (tight check against the f32 reference).
    out_f32 = encoder_layer(x, src_mask, params, n_heads=H,
                            compute_dtype=jnp.float32)
    out_f32 = jax.block_until_ready(out_f32)
    assert jnp.allclose(out_f32, ref, atol=3e-4, rtol=3e-4), \
        f"f32 max abs err {jnp.max(jnp.abs(out_f32 - ref))}"

    # bf16 compute path (MXU-native on v6e/v7x; looser tolerance vs f32 ref).
    out_bf16 = encoder_layer(x, src_mask, params, n_heads=H,
                             compute_dtype=jnp.bfloat16)
    out_bf16 = jax.block_until_ready(out_bf16)
    assert jnp.allclose(out_bf16, ref, atol=1e-2, rtol=1e-2), \
        f"bf16 max abs err {jnp.max(jnp.abs(out_bf16 - ref))}"

    print("KERNEL_OK")
</pallas_src>

<mosaic_0001>
module attributes {stable_mosaic.version = 11 : i64} {
  func.func @_encoder_layer_kernel(%arg0: i32, %arg1: memref<16x32xf32, #tpu.memory_space<vmem>>, %arg2: memref<2x8x8xf32, #tpu.memory_space<vmem>>, %arg3: memref<1x32xf32, #tpu.memory_space<vmem>>, %arg4: memref<1x32xf32, #tpu.memory_space<vmem>>, %arg5: memref<1x32xf32, #tpu.memory_space<vmem>>, %arg6: memref<1x32xf32, #tpu.memory_space<vmem>>, %arg7: memref<32x32xf32, #tpu.memory_space<vmem>>, %arg8: memref<1x32xf32, #tpu.memory_space<vmem>>, %arg9: memref<32x32xf32, #tpu.memory_space<vmem>>, %arg10: memref<1x32xf32, #tpu.memory_space<vmem>>, %arg11: memref<32x32xf32, #tpu.memory_space<vmem>>, %arg12: memref<1x32xf32, #tpu.memory_space<vmem>>, %arg13: memref<32x32xf32, #tpu.memory_space<vmem>>, %arg14: memref<1x32xf32, #tpu.memory_space<vmem>>, %arg15: memref<32x64xf32, #tpu.memory_space<vmem>>, %arg16: memref<1x64xf32, #tpu.memory_space<vmem>>, %arg17: memref<64x32xf32, #tpu.memory_space<vmem>>, %arg18: memref<1x32xf32, #tpu.memory_space<vmem>>, %arg19: memref<16x32xf32, #tpu.memory_space<vmem>>) attributes {dimension_semantics = [#tpu.dimension_semantics<parallel>], iteration_bounds = array<i64: 2>, scalar_prefetch = 0 : i64, scratch_operands = 0 : i64, tpu.core_type = #tpu.core_type<tc>, window_params = [{transform_indices = @transform_0, window_bounds = array<i64: 16, 32>}, {transform_indices = @transform_1, window_bounds = array<i64: 2, 8, 8>}, {pipeline_mode = #tpu.pipeline_mode<synchronous>, transform_indices = @transform_2, window_bounds = array<i64: 1, 32>}, {pipeline_mode = #tpu.pipeline_mode<synchronous>, transform_indices = @transform_3, window_bounds = array<i64: 1, 32>}, {pipeline_mode = #tpu.pipeline_mode<synchronous>, transform_indices = @transform_4, window_bounds = array<i64: 1, 32>}, {pipeline_mode = #tpu.pipeline_mode<synchronous>, transform_indices = @transform_5, window_bounds = array<i64: 1, 32>}, {pipeline_mode = #tpu.pipeline_mode<synchronous>, transform_indices = @transform_6, window_bounds = array<i64: 32, 32>}, {pipeline_mode = #tpu.pipeline_mode<synchronous>, transform_indices = @transform_7, window_bounds = array<i64: 1, 32>}, {pipeline_mode = #tpu.pipeline_mode<synchronous>, transform_indices = @transform_8, window_bounds = array<i64: 32, 32>}, {pipeline_mode = #tpu.pipeline_mode<synchronous>, transform_indices = @transform_9, window_bounds = array<i64: 1, 32>}, {pipeline_mode = #tpu.pipeline_mode<synchronous>, transform_indices = @transform_10, window_bounds = array<i64: 32, 32>}, {pipeline_mode = #tpu.pipeline_mode<synchronous>, transform_indices = @transform_11, window_bounds = array<i64: 1, 32>}, {pipeline_mode = #tpu.pipeline_mode<synchronous>, transform_indices = @transform_12, window_bounds = array<i64: 32, 32>}, {pipeline_mode = #tpu.pipeline_mode<synchronous>, transform_indices = @transform_13, window_bounds = array<i64: 1, 32>}, {pipeline_mode = #tpu.pipeline_mode<synchronous>, transform_indices = @transform_14, window_bounds = array<i64: 32, 64>}, {pipeline_mode = #tpu.pipeline_mode<synchronous>, transform_indices = @transform_15, window_bounds = array<i64: 1, 64>}, {pipeline_mode = #tpu.pipeline_mode<synchronous>, transform_indices = @transform_16, window_bounds = array<i64: 64, 32>}, {pipeline_mode = #tpu.pipeline_mode<synchronous>, transform_indices = @transform_17, window_bounds = array<i64: 1, 32>}, {transform_indices = @transform_18, window_bounds = array<i64: 16, 32>}]} {
    %c0 = arith.constant 0 : index
    %c0_0 = arith.constant 0 : index
    %0 = vector.load %arg1[%c0, %c0_0] : memref<16x32xf32, #tpu.memory_space<vmem>>, vector<16x32xf32>
    %c0_1 = arith.constant 0 : index
    %c0_2 = arith.constant 0 : index
    %c0_3 = arith.constant 0 : index
    %1 = vector.load %arg2[%c0_1, %c0_2, %c0_3] : memref<2x8x8xf32, #tpu.memory_space<vmem>>, vector<2x8x8xf32>
    %cst = arith.constant 0.000000e+00 : f32
    %2 = vector.broadcast %cst : f32 to vector<2x8x8xf32>
    %3 = arith.cmpf one, %1, %2 : vector<2x8x8xf32>
    %cst_4 = arith.constant 0.000000e+00 : f32
    %cst_5 = arith.constant -1.000000e+09 : f32
    %4 = vector.broadcast %cst_4 : f32 to vector<2x8x8xf32>
    %5 = vector.broadcast %cst_5 : f32 to vector<2x8x8xf32>
    %6 = arith.select %3, %4, %5 : vector<2x8x8xi1>, vector<2x8x8xf32>
    %c0_6 = arith.constant 0 : index
    %c0_7 = arith.constant 0 : index
    %7 = vector.load %arg3[%c0_6, %c0_7] : memref<1x32xf32, #tpu.memory_space<vmem>>, vector<1x32xf32>
    %c0_8 = arith.constant 0 : index
    %c0_9 = arith.constant 0 : index
    %8 = vector.load %arg4[%c0_8, %c0_9] : memref<1x32xf32, #tpu.memory_space<vmem>>, vector<1x32xf32>
    %cst_10 = arith.constant dense<0.000000e+00> : vector<16xf32>
    %9 = vector.multi_reduction <add>, %0, %cst_10 [1] : vector<16x32xf32> to vector<16xf32>
    %10 = vector.shape_cast %9 : vector<16xf32> to vector<16x1xf32>
    %cst_11 = arith.constant 3.200000e+01 : f32
    %11 = vector.broadcast %cst_11 : f32 to vector<16x1xf32>
    %12 = arith.divf %10, %11 : vector<16x1xf32>
    %13 = vector.broadcast %12 : vector<16x1xf32> to vector<16x32xf32>
    %14 = arith.subf %0, %13 : vector<16x32xf32>
    %15 = arith.mulf %14, %14 : vector<16x32xf32>
    %cst_12 = arith.constant dense<0.000000e+00> : vector<16xf32>
    %16 = vector.multi_reduction <add>, %15, %cst_12 [1] : vector<16x32xf32> to vector<16xf32>
    %17 = vector.shape_cast %16 : vector<16xf32> to vector<16x1xf32>
    %cst_13 = arith.constant 3.200000e+01 : f32
    %18 = vector.broadcast %cst_13 : f32 to vector<16x1xf32>
    %19 = arith.divf %17, %18 : vector<16x1xf32>
    %20 = vector.broadcast %12 : vector<16x1xf32> to vector<16x32xf32>
    %21 = arith.subf %0, %20 : vector<16x32xf32>
    %cst_14 = arith.constant 9.99999997E-7 : f32
    %22 = vector.broadcast %cst_14 : f32 to vector<16x1xf32>
    %23 = arith.addf %19, %22 : vector<16x1xf32>
    %24 = math.rsqrt %23 : vector<16x1xf32>
    %25 = vector.broadcast %24 : vector<16x1xf32> to vector<16x32xf32>
    %26 = arith.mulf %21, %25 : vector<16x32xf32>
    %27 = vector.broadcast %7 : vector<1x32xf32> to vector<16x32xf32>
    %28 = arith.mulf %26, %27 : vector<16x32xf32>
    %29 = vector.broadcast %8 : vector<1x32xf32> to vector<16x32xf32>
    %30 = arith.addf %28, %29 : vector<16x32xf32>
    %c0_15 = arith.constant 0 : index
    %c0_16 = arith.constant 0 : index
    %31 = vector.load %arg7[%c0_15, %c0_16] : memref<32x32xf32, #tpu.memory_space<vmem>>, vector<32x32xf32>
    %cst_17 = arith.constant dense<0.000000e+00> : vector<16x32xf32>
    %32 = tpu.matmul %30, %31, %cst_17 {dimension_numbers = #tpu.dot_dimension_numbers<[1], [0], [0], [1], [0, 0, 1, 1], [], []>} : vector<16x32xf32>, vector<32x32xf32>, vector<16x32xf32> -> vector<16x32xf32>
    %c0_18 = arith.constant 0 : index
    %c0_19 = arith.constant 0 : index
    %33 = vector.load %arg8[%c0_18, %c0_19] : memref<1x32xf32, #tpu.memory_space<vmem>>, vector<1x32xf32>
    %34 = vector.broadcast %33 : vector<1x32xf32> to vector<16x32xf32>
    %35 = arith.addf %32, %34 : vector<16x32xf32>
    %c0_20 = arith.constant 0 : index
    %c0_21 = arith.constant 0 : index
    %36 = vector.load %arg9[%c0_20, %c0_21] : memref<32x32xf32, #tpu.memory_space<vmem>>, vector<32x32xf32>
    %cst_22 = arith.constant dense<0.000000e+00> : vector<16x32xf32>
    %37 = tpu.matmul %30, %36, %cst_22 {dimension_numbers = #tpu.dot_dimension_numbers<[1], [0], [0], [1], [0, 0, 1, 1], [], []>} : vector<16x32xf32>, vector<32x32xf32>, vector<16x32xf32> -> vector<16x32xf32>
    %c0_23 = arith.constant 0 : index
    %c0_24 = arith.constant 0 : index
    %38 = vector.load %arg10[%c0_23, %c0_24] : memref<1x32xf32, #tpu.memory_space<vmem>>, vector<1x32xf32>
    %39 = vector.broadcast %38 : vector<1x32xf32> to vector<16x32xf32>
    %40 = arith.addf %37, %39 : vector<16x32xf32>
    %c0_25 = arith.constant 0 : index
    %c0_26 = arith.constant 0 : index
    %41 = vector.load %arg11[%c0_25, %c0_26] : memref<32x32xf32, #tpu.memory_space<vmem>>, vector<32x32xf32>
    %cst_27 = arith.constant dense<0.000000e+00> : vector<16x32xf32>
    %42 = tpu.matmul %30, %41, %cst_27 {dimension_numbers = #tpu.dot_dimension_numbers<[1], [0], [0], [1], [0, 0, 1, 1], [], []>} : vector<16x32xf32>, vector<32x32xf32>, vector<16x32xf32> -> vector<16x32xf32>
    %c0_28 = arith.constant 0 : index
    %c0_29 = arith.constant 0 : index
    %43 = vector.load %arg12[%c0_28, %c0_29] : memref<1x32xf32, #tpu.memory_space<vmem>>, vector<1x32xf32>
    %44 = vector.broadcast %43 : vector<1x32xf32> to vector<16x32xf32>
    %45 = arith.addf %42, %44 : vector<16x32xf32>
    %cst_30 = arith.constant 0.000000e+00 : f32
    %46 = vector.broadcast %cst_30 : f32 to vector<16x32xf32>
    %47 = vector.extract_strided_slice %35 {offsets = [0, 0], sizes = [16, 8], strides = [1, 1]} : vector<16x32xf32> to vector<16x8xf32>
    %48 = vector.shape_cast %47 : vector<16x8xf32> to vector<2x8x8xf32>
    %49 = vector.extract_strided_slice %40 {offsets = [0, 0], sizes = [16, 8], strides = [1, 1]} : vector<16x32xf32> to vector<16x8xf32>
    %50 = vector.shape_cast %49 : vector<16x8xf32> to vector<2x8x8xf32>
    %51 = vector.extract_strided_slice %45 {offsets = [0, 0], sizes = [16, 8], strides = [1, 1]} : vector<16x32xf32> to vector<16x8xf32>
    %52 = vector.shape_cast %51 : vector<16x8xf32> to vector<2x8x8xf32>
    "tpu.trace_start"() <{level = 10 : i32, message = "bqd,bkd->bqk"}> : () -> ()
    %cst_31 = arith.constant dense<0.000000e+00> : vector<2x8x8xf32>
    %53 = tpu.matmul %48, %50, %cst_31 {dimension_numbers = #tpu.dot_dimension_numbers<[2], [2], [1], [1], [0, 0, 0, 1, 1, 1], [0], [0]>} : vector<2x8x8xf32>, vector<2x8x8xf32>, vector<2x8x8xf32> -> vector<2x8x8xf32>
    "tpu.trace_stop"() : () -> ()
    %cst_32 = arith.constant 0.353553385 : f32
    %54 = vector.broadcast %cst_32 : f32 to vector<2x8x8xf32>
    %55 = arith.mulf %53, %54 : vector<2x8x8xf32>
    %56 = arith.addf %55, %6 : vector<2x8x8xf32>
    %cst_33 = arith.constant dense<0xFF800000> : vector<2x8xf32>
    %57 = vector.multi_reduction <maximumf>, %56, %cst_33 [2] : vector<2x8x8xf32> to vector<2x8xf32>
    %58 = vector.shape_cast %57 : vector<2x8xf32> to vector<2x8x1xf32>
    %59 = vector.broadcast %58 : vector<2x8x1xf32> to vector<2x8x8xf32>
    %60 = arith.subf %56, %59 : vector<2x8x8xf32>
    %61 = math.exp %60 : vector<2x8x8xf32>
    %cst_34 = arith.constant dense<0.000000e+00> : vector<2x8xf32>
    %62 = vector.multi_reduction <add>, %61, %cst_34 [2] : vector<2x8x8xf32> to vector<2x8xf32>
    %63 = vector.shape_cast %62 : vector<2x8xf32> to vector<2x8x1xf32>
    %64 = tpu.reciprocal %63 {approx = true} : vector<2x8x1xf32> -> vector<2x8x1xf32>
    %65 = vector.broadcast %64 : vector<2x8x1xf32> to vector<2x8x8xf32>
    %66 = arith.mulf %61, %65 : vector<2x8x8xf32>
    "tpu.trace_start"() <{level = 10 : i32, message = "bqk,bkd->bqd"}> : () -> ()
    %cst_35 = arith.constant dense<0.000000e+00> : vector<2x8x8xf32>
    %67 = tpu.matmul %66, %52, %cst_35 {dimension_numbers = #tpu.dot_dimension_numbers<[2], [1], [1], [2], [0, 0, 0, 1, 1, 2], [0], [0]>} : vector<2x8x8xf32>, vector<2x8x8xf32>, vector<2x8x8xf32> -> vector<2x8x8xf32>
    "tpu.trace_stop"() : () -> ()
    %68 = vector.shape_cast %67 : vector<2x8x8xf32> to vector<16x8xf32>
    %c0_36 = arith.constant 0 : index
    %c0_37 = arith.constant 0 : index
    %69 = vector.load %arg13[%c0_36, %c0_37] : memref<32x32xf32, #tpu.memory_space<vmem>>, vector<8x32xf32>
    %cst_38 = arith.constant dense<0.000000e+00> : vector<16x32xf32>
    %70 = tpu.matmul %68, %69, %cst_38 {dimension_numbers = #tpu.dot_dimension_numbers<[1], [0], [0], [1], [0, 0, 1, 1], [], []>} : vector<16x8xf32>, vector<8x32xf32>, vector<16x32xf32> -> vector<16x32xf32>
    %71 = arith.addf %46, %70 : vector<16x32xf32>
    %72 = vector.extract_strided_slice %35 {offsets = [0, 8], sizes = [16, 8], strides = [1, 1]} : vector<16x32xf32> to vector<16x8xf32>
    %73 = vector.shape_cast %72 : vector<16x8xf32> to vector<2x8x8xf32>
    %74 = vector.extract_strided_slice %40 {offsets = [0, 8], sizes = [16, 8], strides = [1, 1]} : vector<16x32xf32> to vector<16x8xf32>
    %75 = vector.shape_cast %74 : vector<16x8xf32> to vector<2x8x8xf32>
    %76 = vector.extract_strided_slice %45 {offsets = [0, 8], sizes = [16, 8], strides = [1, 1]} : vector<16x32xf32> to vector<16x8xf32>
    %77 = vector.shape_cast %76 : vector<16x8xf32> to vector<2x8x8xf32>
    "tpu.trace_start"() <{level = 10 : i32, message = "bqd,bkd->bqk"}> : () -> ()
    %cst_39 = arith.constant dense<0.000000e+00> : vector<2x8x8xf32>
    %78 = tpu.matmul %73, %75, %cst_39 {dimension_numbers = #tpu.dot_dimension_numbers<[2], [2], [1], [1], [0, 0, 0, 1, 1, 1], [0], [0]>} : vector<2x8x8xf32>, vector<2x8x8xf32>, vector<2x8x8xf32> -> vector<2x8x8xf32>
    "tpu.trace_stop"() : () -> ()
    %cst_40 = arith.constant 0.353553385 : f32
    %79 = vector.broadcast %cst_40 : f32 to vector<2x8x8xf32>
    %80 = arith.mulf %78, %79 : vector<2x8x8xf32>
    %81 = arith.addf %80, %6 : vector<2x8x8xf32>
    %cst_41 = arith.constant dense<0xFF800000> : vector<2x8xf32>
    %82 = vector.multi_reduction <maximumf>, %81, %cst_41 [2] : vector<2x8x8xf32> to vector<2x8xf32>
    %83 = vector.shape_cast %82 : vector<2x8xf32> to vector<2x8x1xf32>
    %84 = vector.broadcast %83 : vector<2x8x1xf32> to vector<2x8x8xf32>
    %85 = arith.subf %81, %84 : vector<2x8x8xf32>
    %86 = math.exp %85 : vector<2x8x8xf32>
    %cst_42 = arith.constant dense<0.000000e+00> : vector<2x8xf32>
    %87 = vector.multi_reduction <add>, %86, %cst_42 [2] : vector<2x8x8xf32> to vector<2x8xf32>
    %88 = vector.shape_cast %87 : vector<2x8xf32> to vector<2x8x1xf32>
    %89 = tpu.reciprocal %88 {approx = true} : vector<2x8x1xf32> -> vector<2x8x1xf32>
    %90 = vector.broadcast %89 : vector<2x8x1xf32> to vector<2x8x8xf32>
    %91 = arith.mulf %86, %90 : vector<2x8x8xf32>
    "tpu.trace_start"() <{level = 10 : i32, message = "bqk,bkd->bqd"}> : () -> ()
    %cst_43 = arith.constant dense<0.000000e+00> : vector<2x8x8xf32>
    %92 = tpu.matmul %91, %77, %cst_43 {dimension_numbers = #tpu.dot_dimension_numbers<[2], [1], [1], [2], [0, 0, 0, 1, 1, 2], [0], [0]>} : vector<2x8x8xf32>, vector<2x8x8xf32>, vector<2x8x8xf32> -> vector<2x8x8xf32>
    "tpu.trace_stop"() : () -> ()
    %93 = vector.shape_cast %92 : vector<2x8x8xf32> to vector<16x8xf32>
    %c8 = arith.constant 8 : index
    %c0_44 = arith.constant 0 : index
    %94 = vector.load %arg13[%c8, %c0_44] : memref<32x32xf32, #tpu.memory_space<vmem>>, vector<8x32xf32>
    %cst_45 = arith.constant dense<0.000000e+00> : vector<16x32xf32>
    %95 = tpu.matmul %93, %94, %cst_45 {dimension_numbers = #tpu.dot_dimension_numbers<[1], [0], [0], [1], [0, 0, 1, 1], [], []>} : vector<16x8xf32>, vector<8x32xf32>, vector<16x32xf32> -> vector<16x32xf32>
    %96 = arith.addf %71, %95 : vector<16x32xf32>
    %97 = vector.extract_strided_slice %35 {offsets = [0, 16], sizes = [16, 8], strides = [1, 1]} : vector<16x32xf32> to vector<16x8xf32>
    %98 = vector.shape_cast %97 : vector<16x8xf32> to vector<2x8x8xf32>
    %99 = vector.extract_strided_slice %40 {offsets = [0, 16], sizes = [16, 8], strides = [1, 1]} : vector<16x32xf32> to vector<16x8xf32>
    %100 = vector.shape_cast %99 : vector<16x8xf32> to vector<2x8x8xf32>
    %101 = vector.extract_strided_slice %45 {offsets = [0, 16], sizes = [16, 8], strides = [1, 1]} : vector<16x32xf32> to vector<16x8xf32>
    %102 = vector.shape_cast %101 : vector<16x8xf32> to vector<2x8x8xf32>
    "tpu.trace_start"() <{level = 10 : i32, message = "bqd,bkd->bqk"}> : () -> ()
    %cst_46 = arith.constant dense<0.000000e+00> : vector<2x8x8xf32>
    %103 = tpu.matmul %98, %100, %cst_46 {dimension_numbers = #tpu.dot_dimension_numbers<[2], [2], [1], [1], [0, 0, 0, 1, 1, 1], [0], [0]>} : vector<2x8x8xf32>, vector<2x8x8xf32>, vector<2x8x8xf32> -> vector<2x8x8xf32>
    "tpu.trace_stop"() : () -> ()
    %cst_47 = arith.constant 0.353553385 : f32
    %104 = vector.broadcast %cst_47 : f32 to vector<2x8x8xf32>
    %105 = arith.mulf %103, %104 : vector<2x8x8xf32>
    %106 = arith.addf %105, %6 : vector<2x8x8xf32>
    %cst_48 = arith.constant dense<0xFF800000> : vector<2x8xf32>
    %107 = vector.multi_reduction <maximumf>, %106, %cst_48 [2] : vector<2x8x8xf32> to vector<2x8xf32>
    %108 = vector.shape_cast %107 : vector<2x8xf32> to vector<2x8x1xf32>
    %109 = vector.broadcast %108 : vector<2x8x1xf32> to vector<2x8x8xf32>
    %110 = arith.subf %106, %109 : vector<2x8x8xf32>
    %111 = math.exp %110 : vector<2x8x8xf32>
    %cst_49 = arith.constant dense<0.000000e+00> : vector<2x8xf32>
    %112 = vector.multi_reduction <add>, %111, %cst_49 [2] : vector<2x8x8xf32> to vector<2x8xf32>
    %113 = vector.shape_cast %112 : vector<2x8xf32> to vector<2x8x1xf32>
    %114 = tpu.reciprocal %113 {approx = true} : vector<2x8x1xf32> -> vector<2x8x1xf32>
    %115 = vector.broadcast %114 : vector<2x8x1xf32> to vector<2x8x8xf32>
    %116 = arith.mulf %111, %115 : vector<2x8x8xf32>
    "tpu.trace_start"() <{level = 10 : i32, message = "bqk,bkd->bqd"}> : () -> ()
    %cst_50 = arith.constant dense<0.000000e+00> : vector<2x8x8xf32>
    %117 = tpu.matmul %116, %102, %cst_50 {dimension_numbers = #tpu.dot_dimension_numbers<[2], [1], [1], [2], [0, 0, 0, 1, 1, 2], [0], [0]>} : vector<2x8x8xf32>, vector<2x8x8xf32>, vector<2x8x8xf32> -> vector<2x8x8xf32>
    "tpu.trace_stop"() : () -> ()
    %118 = vector.shape_cast %117 : vector<2x8x8xf32> to vector<16x8xf32>
    %c16 = arith.constant 16 : index
    %c0_51 = arith.constant 0 : index
    %119 = vector.load %arg13[%c16, %c0_51] : memref<32x32xf32, #tpu.memory_space<vmem>>, vector<8x32xf32>
    %cst_52 = arith.constant dense<0.000000e+00> : vector<16x32xf32>
    %120 = tpu.matmul %118, %119, %cst_52 {dimension_numbers = #tpu.dot_dimension_numbers<[1], [0], [0], [1], [0, 0, 1, 1], [], []>} : vector<16x8xf32>, vector<8x32xf32>, vector<16x32xf32> -> vector<16x32xf32>
    %121 = arith.addf %96, %120 : vector<16x32xf32>
    %122 = vector.extract_strided_slice %35 {offsets = [0, 24], sizes = [16, 8], strides = [1, 1]} : vector<16x32xf32> to vector<16x8xf32>
    %123 = vector.shape_cast %122 : vector<16x8xf32> to vector<2x8x8xf32>
    %124 = vector.extract_strided_slice %40 {offsets = [0, 24], sizes = [16, 8], strides = [1, 1]} : vector<16x32xf32> to vector<16x8xf32>
    %125 = vector.shape_cast %124 : vector<16x8xf32> to vector<2x8x8xf32>
    %126 = vector.extract_strided_slice %45 {offsets = [0, 24], sizes = [16, 8], strides = [1, 1]} : vector<16x32xf32> to vector<16x8xf32>
    %127 = vector.shape_cast %126 : vector<16x8xf32> to vector<2x8x8xf32>
    "tpu.trace_start"() <{level = 10 : i32, message = "bqd,bkd->bqk"}> : () -> ()
    %cst_53 = arith.constant dense<0.000000e+00> : vector<2x8x8xf32>
    %128 = tpu.matmul %123, %125, %cst_53 {dimension_numbers = #tpu.dot_dimension_numbers<[2], [2], [1], [1], [0, 0, 0, 1, 1, 1], [0], [0]>} : vector<2x8x8xf32>, vector<2x8x8xf32>, vector<2x8x8xf32> -> vector<2x8x8xf32>
    "tpu.trace_stop"() : () -> ()
    %cst_54 = arith.constant 0.353553385 : f32
    %129 = vector.broadcast %cst_54 : f32 to vector<2x8x8xf32>
    %130 = arith.mulf %128, %129 : vector<2x8x8xf32>
    %131 = arith.addf %130, %6 : vector<2x8x8xf32>
    %cst_55 = arith.constant dense<0xFF800000> : vector<2x8xf32>
    %132 = vector.multi_reduction <maximumf>, %131, %cst_55 [2] : vector<2x8x8xf32> to vector<2x8xf32>
    %133 = vector.shape_cast %132 : vector<2x8xf32> to vector<2x8x1xf32>
    %134 = vector.broadcast %133 : vector<2x8x1xf32> to vector<2x8x8xf32>
    %135 = arith.subf %131, %134 : vector<2x8x8xf32>
    %136 = math.exp %135 : vector<2x8x8xf32>
    %cst_56 = arith.constant dense<0.000000e+00> : vector<2x8xf32>
    %137 = vector.multi_reduction <add>, %136, %cst_56 [2] : vector<2x8x8xf32> to vector<2x8xf32>
    %138 = vector.shape_cast %137 : vector<2x8xf32> to vector<2x8x1xf32>
    %139 = tpu.reciprocal %138 {approx = true} : vector<2x8x1xf32> -> vector<2x8x1xf32>
    %140 = vector.broadcast %139 : vector<2x8x1xf32> to vector<2x8x8xf32>
    %141 = arith.mulf %136, %140 : vector<2x8x8xf32>
    "tpu.trace_start"() <{level = 10 : i32, message = "bqk,bkd->bqd"}> : () -> ()
    %cst_57 = arith.constant dense<0.000000e+00> : vector<2x8x8xf32>
    %142 = tpu.matmul %141, %127, %cst_57 {dimension_numbers = #tpu.dot_dimension_numbers<[2], [1], [1], [2], [0, 0, 0, 1, 1, 2], [0], [0]>} : vector<2x8x8xf32>, vector<2x8x8xf32>, vector<2x8x8xf32> -> vector<2x8x8xf32>
    "tpu.trace_stop"() : () -> ()
    %143 = vector.shape_cast %142 : vector<2x8x8xf32> to vector<16x8xf32>
    %c24 = arith.constant 24 : index
    %c0_58 = arith.constant 0 : index
    %144 = vector.load %arg13[%c24, %c0_58] : memref<32x32xf32, #tpu.memory_space<vmem>>, vector<8x32xf32>
    %cst_59 = arith.constant dense<0.000000e+00> : vector<16x32xf32>
    %145 = tpu.matmul %143, %144, %cst_59 {dimension_numbers = #tpu.dot_dimension_numbers<[1], [0], [0], [1], [0, 0, 1, 1], [], []>} : vector<16x8xf32>, vector<8x32xf32>, vector<16x32xf32> -> vector<16x32xf32>
    %146 = arith.addf %121, %145 : vector<16x32xf32>
    %147 = arith.addf %0, %146 : vector<16x32xf32>
    %c0_60 = arith.constant 0 : index
    %c0_61 = arith.constant 0 : index
    %148 = vector.load %arg14[%c0_60, %c0_61] : memref<1x32xf32, #tpu.memory_space<vmem>>, vector<1x32xf32>
    %149 = vector.broadcast %148 : vector<1x32xf32> to vector<16x32xf32>
    %150 = arith.addf %147, %149 : vector<16x32xf32>
    %c0_62 = arith.constant 0 : index
    %c0_63 = arith.constant 0 : index
    %151 = vector.load %arg5[%c0_62, %c0_63] : memref<1x32xf32, #tpu.memory_space<vmem>>, vector<1x32xf32>
    %c0_64 = arith.constant 0 : index
    %c0_65 = arith.constant 0 : index
    %152 = vector.load %arg6[%c0_64, %c0_65] : memref<1x32xf32, #tpu.memory_space<vmem>>, vector<1x32xf32>
    %cst_66 = arith.constant dense<0.000000e+00> : vector<16xf32>
    %153 = vector.multi_reduction <add>, %150, %cst_66 [1] : vector<16x32xf32> to vector<16xf32>
    %154 = vector.shape_cast %153 : vector<16xf32> to vector<16x1xf32>
    %cst_67 = arith.constant 3.200000e+01 : f32
    %155 = vector.broadcast %cst_67 : f32 to vector<16x1xf32>
    %156 = arith.divf %154, %155 : vector<16x1xf32>
    %157 = vector.broadcast %156 : vector<16x1xf32> to vector<16x32xf32>
    %158 = arith.subf %150, %157 : vector<16x32xf32>
    %159 = arith.mulf %158, %158 : vector<16x32xf32>
    %cst_68 = arith.constant dense<0.000000e+00> : vector<16xf32>
    %160 = vector.multi_reduction <add>, %159, %cst_68 [1] : vector<16x32xf32> to vector<16xf32>
    %161 = vector.shape_cast %160 : vector<16xf32> to vector<16x1xf32>
    %cst_69 = arith.constant 3.200000e+01 : f32
    %162 = vector.broadcast %cst_69 : f32 to vector<16x1xf32>
    %163 = arith.divf %161, %162 : vector<16x1xf32>
    %164 = vector.broadcast %156 : vector<16x1xf32> to vector<16x32xf32>
    %165 = arith.subf %150, %164 : vector<16x32xf32>
    %cst_70 = arith.constant 9.99999997E-7 : f32
    %166 = vector.broadcast %cst_70 : f32 to vector<16x1xf32>
    %167 = arith.addf %163, %166 : vector<16x1xf32>
    %168 = math.rsqrt %167 : vector<16x1xf32>
    %169 = vector.broadcast %168 : vector<16x1xf32> to vector<16x32xf32>
    %170 = arith.mulf %165, %169 : vector<16x32xf32>
    %171 = vector.broadcast %151 : vector<1x32xf32> to vector<16x32xf32>
    %172 = arith.mulf %170, %171 : vector<16x32xf32>
    %173 = vector.broadcast %152 : vector<1x32xf32> to vector<16x32xf32>
    %174 = arith.addf %172, %173 : vector<16x32xf32>
    %c0_71 = arith.constant 0 : index
    %c0_72 = arith.constant 0 : index
    %175 = vector.load %arg15[%c0_71, %c0_72] : memref<32x64xf32, #tpu.memory_space<vmem>>, vector<32x64xf32>
    %cst_73 = arith.constant dense<0.000000e+00> : vector<16x64xf32>
    %176 = tpu.matmul %174, %175, %cst_73 {dimension_numbers = #tpu.dot_dimension_numbers<[1], [0], [0], [1], [0, 0, 1, 1], [], []>} : vector<16x32xf32>, vector<32x64xf32>, vector<16x64xf32> -> vector<16x64xf32>
    %c0_74 = arith.constant 0 : index
    %c0_75 = arith.constant 0 : index
    %177 = vector.load %arg16[%c0_74, %c0_75] : memref<1x64xf32, #tpu.memory_space<vmem>>, vector<1x64xf32>
    %178 = vector.broadcast %177 : vector<1x64xf32> to vector<16x64xf32>
    %179 = arith.addf %176, %178 : vector<16x64xf32>
    %cst_76 = arith.constant 0.000000e+00 : f32
    %180 = vector.broadcast %cst_76 : f32 to vector<16x64xf32>
    %181 = arith.maximumf %179, %180 : vector<16x64xf32>
    %c0_77 = arith.constant 0 : index
    %c0_78 = arith.constant 0 : index
    %182 = vector.load %arg17[%c0_77, %c0_78] : memref<64x32xf32, #tpu.memory_space<vmem>>, vector<64x32xf32>
    %cst_79 = arith.constant dense<0.000000e+00> : vector<16x32xf32>
    %183 = tpu.matmul %181, %182, %cst_79 {dimension_numbers = #tpu.dot_dimension_numbers<[1], [0], [0], [1], [0, 0, 1, 1], [], []>} : vector<16x64xf32>, vector<64x32xf32>, vector<16x32xf32> -> vector<16x32xf32>
    %c0_80 = arith.constant 0 : index
    %c0_81 = arith.constant 0 : index
    %184 = vector.load %arg18[%c0_80, %c0_81] : memref<1x32xf32, #tpu.memory_space<vmem>>, vector<1x32xf32>
    %185 = vector.broadcast %184 : vector<1x32xf32> to vector<16x32xf32>
    %186 = arith.addf %183, %185 : vector<16x32xf32>
    %187 = arith.addf %150, %186 : vector<16x32xf32>
    %c0_82 = arith.constant 0 : index
    %c0_83 = arith.constant 0 : index
    %188 = vector.load %arg19[%c0_82, %c0_83] : memref<16x32xf32, #tpu.memory_space<vmem>>, vector<16x32xf32>
    tpu.vector_store %arg19[%c0_82, %c0_83], %187 {strides = array<i32>} : memref<16x32xf32, #tpu.memory_space<vmem>>, vector<16x32xf32>,
    return
  }
  func.func @transform_0(%arg0: i32) -> (i32, i32) {
    %c0_i32 = arith.constant 0 : i32
    %c0_i32_0 = arith.constant 0 : i32
    return %arg0, %c0_i32 : i32, i32
  }
  func.func @transform_1(%arg0: i32) -> (i32, i32, i32) {
    %c0_i32 = arith.constant 0 : i32
    %c0_i32_0 = arith.constant 0 : i32
    %c0_i32_1 = arith.constant 0 : i32
    return %arg0, %c0_i32, %c0_i32_0 : i32, i32, i32
  }
  func.func @transform_2(%arg0: i32) -> (i32, i32) {
    %c0_i32 = arith.constant 0 : i32
    %c0_i32_0 = arith.constant 0 : i32
    %c0_i32_1 = arith.constant 0 : i32
    return %c0_i32, %c0_i32_0 : i32, i32
  }
  func.func @transform_3(%arg0: i32) -> (i32, i32) {
    %c0_i32 = arith.constant 0 : i32
    %c0_i32_0 = arith.constant 0 : i32
    %c0_i32_1 = arith.constant 0 : i32
    return %c0_i32, %c0_i32_0 : i32, i32
  }
  func.func @transform_4(%arg0: i32) -> (i32, i32) {
    %c0_i32 = arith.constant 0 : i32
    %c0_i32_0 = arith.constant 0 : i32
    %c0_i32_1 = arith.constant 0 : i32
    return %c0_i32, %c0_i32_0 : i32, i32
  }
  func.func @transform_5(%arg0: i32) -> (i32, i32) {
    %c0_i32 = arith.constant 0 : i32
    %c0_i32_0 = arith.constant 0 : i32
    %c0_i32_1 = arith.constant 0 : i32
    return %c0_i32, %c0_i32_0 : i32, i32
  }
  func.func @transform_6(%arg0: i32) -> (i32, i32) {
    %c0_i32 = arith.constant 0 : i32
    %c0_i32_0 = arith.constant 0 : i32
    %c0_i32_1 = arith.constant 0 : i32
    return %c0_i32, %c0_i32_0 : i32, i32
  }
  func.func @transform_7(%arg0: i32) -> (i32, i32) {
    %c0_i32 = arith.constant 0 : i32
    %c0_i32_0 = arith.constant 0 : i32
    %c0_i32_1 = arith.constant 0 : i32
    return %c0_i32, %c0_i32_0 : i32, i32
  }
  func.func @transform_8(%arg0: i32) -> (i32, i32) {
    %c0_i32 = arith.constant 0 : i32
    %c0_i32_0 = arith.constant 0 : i32
    %c0_i32_1 = arith.constant 0 : i32
    return %c0_i32, %c0_i32_0 : i32, i32
  }
  func.func @transform_9(%arg0: i32) -> (i32, i32) {
    %c0_i32 = arith.constant 0 : i32
    %c0_i32_0 = arith.constant 0 : i32
    %c0_i32_1 = arith.constant 0 : i32
    return %c0_i32, %c0_i32_0 : i32, i32
  }
  func.func @transform_10(%arg0: i32) -> (i32, i32) {
    %c0_i32 = arith.constant 0 : i32
    %c0_i32_0 = arith.constant 0 : i32
    %c0_i32_1 = arith.constant 0 : i32
    return %c0_i32, %c0_i32_0 : i32, i32
  }
  func.func @transform_11(%arg0: i32) -> (i32, i32) {
    %c0_i32 = arith.constant 0 : i32
    %c0_i32_0 = arith.constant 0 : i32
    %c0_i32_1 = arith.constant 0 : i32
    return %c0_i32, %c0_i32_0 : i32, i32
  }
  func.func @transform_12(%arg0: i32) -> (i32, i32) {
    %c0_i32 = arith.constant 0 : i32
    %c0_i32_0 = arith.constant 0 : i32
    %c0_i32_1 = arith.constant 0 : i32
    return %c0_i32, %c0_i32_0 : i32, i32
  }
  func.func @transform_13(%arg0: i32) -> (i32, i32) {
    %c0_i32 = arith.constant 0 : i32
    %c0_i32_0 = arith.constant 0 : i32
    %c0_i32_1 = arith.constant 0 : i32
    return %c0_i32, %c0_i32_0 : i32, i32
  }
  func.func @transform_14(%arg0: i32) -> (i32, i32) {
    %c0_i32 = arith.constant 0 : i32
    %c0_i32_0 = arith.constant 0 : i32
    %c0_i32_1 = arith.constant 0 : i32
    return %c0_i32, %c0_i32_0 : i32, i32
  }
  func.func @transform_15(%arg0: i32) -> (i32, i32) {
    %c0_i32 = arith.constant 0 : i32
    %c0_i32_0 = arith.constant 0 : i32
    %c0_i32_1 = arith.constant 0 : i32
    return %c0_i32, %c0_i32_0 : i32, i32
  }
  func.func @transform_16(%arg0: i32) -> (i32, i32) {
    %c0_i32 = arith.constant 0 : i32
    %c0_i32_0 = arith.constant 0 : i32
    %c0_i32_1 = arith.constant 0 : i32
    return %c0_i32, %c0_i32_0 : i32, i32
  }
  func.func @transform_17(%arg0: i32) -> (i32, i32) {
    %c0_i32 = arith.constant 0 : i32
    %c0_i32_0 = arith.constant 0 : i32
    %c0_i32_1 = arith.constant 0 : i32
    return %c0_i32, %c0_i32_0 : i32, i32
  }
  func.func @transform_18(%arg0: i32) -> (i32, i32) {
    %c0_i32 = arith.constant 0 : i32
    %c0_i32_0 = arith.constant 0 : i32
    return %arg0, %c0_i32 : i32, i32
  }
}

</mosaic_0001>

<llo_original>
// kernel: tpu_custom_call.1
$region0: #{tpu_custom_call.1}
  #allocation0 [shape = 'u32[]', space=smem, size = 0x4, offset = 0x4, fixed_abs, tag = 'smem constant byte address 0x4 - core index']
  #allocation1 [shape = 'u32[72,128]{1,0:T(1,128)}', space=vmem, size = 0x9000, scoped, tag = 'internal scratch']
  %s0 = inlined_call_operand.vmem [shape: f32[32,32], index: 0, kind: input, shape index: {}]
  %s1 = inlined_call_operand.vmem [shape: f32[4,8,8], index: 1, kind: input, shape index: {}]
  %s2 = inlined_call_operand.vmem [shape: f32[1,32], index: 2, kind: input, shape index: {}]
  %s3 = inlined_call_operand.hbm [shape: f32[1,32], index: 3, kind: input, shape index: {}]
  %s4 = inlined_call_operand.vmem [shape: f32[1,32], index: 4, kind: input, shape index: {}]
  %s5 = inlined_call_operand.vmem [shape: f32[1,32], index: 5, kind: input, shape index: {}]
  %s6 = inlined_call_operand.vmem [shape: f32[32,32], index: 6, kind: input, shape index: {}]
  %s7 = inlined_call_operand.vmem [shape: f32[1,32], index: 7, kind: input, shape index: {}]
  %s8 = inlined_call_operand.hbm [shape: f32[32,32], index: 8, kind: input, shape index: {}]
  %s9 = inlined_call_operand.vmem [shape: f32[1,32], index: 9, kind: input, shape index: {}]
  %s10 = inlined_call_operand.hbm [shape: f32[32,32], index: 10, kind: input, shape index: {}]
  %s11 = inlined_call_operand.vmem [shape: f32[1,32], index: 11, kind: input, shape index: {}]
  %s12 = inlined_call_operand.hbm [shape: f32[32,32], index: 12, kind: input, shape index: {}]
  %s13 = inlined_call_operand.vmem [shape: f32[1,32], index: 13, kind: input, shape index: {}]
  %s14 = inlined_call_operand.hbm [shape: f32[32,64], index: 14, kind: input, shape index: {}]
  %s15 = inlined_call_operand.vmem [shape: f32[1,64], index: 15, kind: input, shape index: {}]
  %s16 = inlined_call_operand.vmem [shape: f32[64,32], index: 16, kind: input, shape index: {}]
  %s17 = inlined_call_operand.vmem [shape: f32[1,32], index: 17, kind: input, shape index: {}]
  %s18 = inlined_call_operand.hbm [shape: f32[32,32], index: 18, kind: output, shape index: {}]
  %s19 = sld [smem:[#allocation0]]
  $region125: #{tpu_custom_call.1} parent=0
    _
  %s21 = ssub.s32 1, %s19
  %s22 = scalar_select 0, %s21, %s19
  $region1: #{tpu_custom_call.1} parent=0
    #allocation2 [shape = 'u8[512]{0}', space=vmem, size = 0x400, scoped, tag = 'input window, operand 3, single buffered']
    #allocation3 [shape = 's32[2]{0}', space=sflag, size = 0x8, scoped, tag = 'scoped memory for tpu_custom_call.1']
    #allocation4 [shape = 's32[2]{0}', space=sflag, size = 0x8, scoped, tag = 'scoped memory for tpu_custom_call.1']
    #allocation5 [shape = 'u8[16384]{0}', space=vmem, size = 0x4000, scoped, tag = 'input window, operand 8, single buffered']
    #allocation6 [shape = 's32[1]{0}', space=sflag, size = 0x4, scoped, tag = 'scoped memory for tpu_custom_call.1']
    #allocation7 [shape = 'u8[16384]{0}', space=vmem, size = 0x4000, scoped, tag = 'input window, operand 10, single buffered']
    #allocation8 [shape = 'u8[16384]{0}', space=vmem, size = 0x4000, scoped, tag = 'input window, operand 12, single buffered']
    #allocation9 [shape = 's32[1]{0}', space=sflag, size = 0x4, scoped, tag = 'scoped memory for tpu_custom_call.1']
    #allocation10 [shape = 'u8[16384]{0}', space=vmem, size = 0x4000, scoped, tag = 'input window, operand 14, single buffered']
    #allocation11 [shape = 'u8[16384]{0}', space=vmem, size = 0x4000, scoped, tag = 'output window, operand 0']
    %23 = vsyncpa [#allocation3], 0
    %24 = vsyncpa [#allocation6], 0
    %25 = vsyncpa [#allocation9], 0
    %26 = vsyncpa [#allocation4], 0
    %s27 = scalar_lea.sflag [#allocation4], 1
    %28 = vsyncpa %s27, 0
    loop: start=0, step=1, limit=4
    $region2: #{tpu_custom_call.1} parent=1 // loop_pre_header
      _
    $region3: #{tpu_custom_call.1} parent=1 // loop_header
      %s30 = sphi 0, %s34
      %p31 = scmp.ge.s32.totalorder %s30, 4
      %s40 = sphi 0, %s42
      %s43 = sphi 0, %s40
      %s44 = sphi 0, %s43
      %s60 = sphi 0, %s44
      %s66 = sphi 0, %s68
      %s69 = sphi 0, %s66
      %s70 = sphi 0, %s69
      %s86 = sphi 0, %s70
      %s90 = sphi 0, %s90
      %s92 = sphi 0, %s90
      %s93 = sphi 0, %s92
      %s107 = sphi 0, %s93
      %s111 = sphi 0, %s111
      %s113 = sphi 0, %s111
      %s114 = sphi 0, %s113
      %s128 = sphi 0, %s114
      %s132 = sphi 0, %s132
      %s134 = sphi 0, %s132
      %s135 = sphi 0, %s134
      %s149 = sphi 0, %s135
      %s153 = sphi 0, %s153
      %s155 = sphi 0, %s153
      %s156 = sphi 0, %s155
      %s170 = sphi 0, %s156
      %s174 = sphi 0, %s174
      %s176 = sphi 0, %s174
      %s177 = sphi 0, %s176
      %s191 = sphi 0, %s177
      %s195 = sphi 0, %s195
      %s197 = sphi 0, %s195
      %s198 = sphi 0, %s197
      %s212 = sphi 0, %s198
      %s216 = sphi 0, %s216
      %s218 = sphi 0, %s216
      %s219 = sphi 0, %s218
      %s233 = sphi 0, %s219
      %s237 = sphi 0, %s237
      %s239 = sphi 0, %s237
      %s240 = sphi 0, %s239
      %s254 = sphi 0, %s240
      %s258 = sphi 0, %s258
      %s260 = sphi 0, %s258
      %s261 = sphi 0, %s260
      %s275 = sphi 0, %s261
      %s279 = sphi 0, %s279
      %s281 = sphi 0, %s279
      %s282 = sphi 0, %s281
      %s296 = sphi 0, %s282
      %s300 = sphi 0, %s300
      %s302 = sphi 0, %s300
      %s303 = sphi 0, %s302
      %s317 = sphi 0, %s303
      %s321 = sphi 0, %s321
      %s323 = sphi 0, %s321
      %s324 = sphi 0, %s323
      %s338 = sphi 0, %s324
      %s342 = sphi 0, %s342
      %s344 = sphi 0, %s342
      %s345 = sphi 0, %s344
      %s359 = sphi 0, %s345
      %s363 = sphi 0, %s363
      %s365 = sphi 0, %s363
      %s366 = sphi 0, %s365
      %s380 = sphi 0, %s366
      %s384 = sphi 0, %s384
      %s386 = sphi 0, %s384
      %s387 = sphi 0, %s386
      %s401 = sphi 0, %s387
      %s405 = sphi 0, %s405
      %s407 = sphi 0, %s405
      %s408 = sphi 0, %s407
      %s422 = sphi 0, %s408
      %s428 = sphi 0, %s430
      %s431 = sphi 0, %s428
      %s432 = sphi 0, %s431
      %s448 = sphi 0, %s432
    $region4: #{tpu_custom_call.1} parent=1 // loop_header_branch
      %33 = sbr.rel (%p31) target = $region8
    $region5: #{tpu_custom_call.1} parent=1 // loop_body
      %s35 = ssub.s32 %s30, 1
      %s36 = ssub.s32 %s30, 2
      %s37 = sadd.s32 %s30, 1
      %s38 = ssub.s32 %s30, %s37
      %p39 = scmp.eq.s32.totalorder %s38, 0
      %s41 = sadd.s32 %s40, 1
      %s42 = scalar_select %p39, %s40, %s41
      %p45 = pneg %p39
      %p46 = scmp.eq.s32.totalorder %s30, 1
      %p47 = por %p45, %p46
      %p48 = scmp.ne.s32.totalorder %s40, %s43
      %p49 = scmp.eq.s32.totalorder %s30, 0
      %p50 = por %p48, %p49
      %p51 = scmp.ne.s32.totalorder %s40, %s43
      %p52 = scmp.eq.s32.totalorder %s35, 1
      %p53 = por %p51, %p52
      %p54 = scmp.ne.s32.totalorder %s43, %s44
      %p55 = scmp.eq.s32.totalorder %s35, 0
      %p56 = por %p54, %p55
      %p57 = scmp.ne.s32.totalorder %s43, %s44
      %p58 = scmp.eq.s32.totalorder %s36, 1
      %p59 = por %p57, %p58
      %p61 = scmp.ne.s32.totalorder %s44, %s60
      %p62 = scmp.eq.s32.totalorder %s36, 0
      %p63 = por %p61, %p62
      %s64 = ssub.s32 %s30, %s37
      %p65 = scmp.eq.s32.totalorder %s64, 0
      %s67 = sadd.s32 %s66, 1
      %s68 = scalar_select %p65, %s66, %s67
      %p71 = pneg %p65
      %p72 = scmp.eq.s32.totalorder %s30, 1
      %p73 = por %p71, %p72
      %p74 = scmp.ne.s32.totalorder %s66, %s69
      %p75 = scmp.eq.s32.totalorder %s30, 0
      %p76 = por %p74, %p75
      %p77 = scmp.ne.s32.totalorder %s66, %s69
      %p78 = scmp.eq.s32.totalorder %s35, 1
      %p79 = por %p77, %p78
      %p80 = scmp.ne.s32.totalorder %s69, %s70
      %p81 = scmp.eq.s32.totalorder %s35, 0
      %p82 = por %p80, %p81
      %p83 = scmp.ne.s32.totalorder %s69, %s70
      %p84 = scmp.eq.s32.totalorder %s36, 1
      %p85 = por %p83, %p84
      %p87 = scmp.ne.s32.totalorder %s70, %s86
      %p88 = scmp.eq.s32.totalorder %s36, 0
      %p89 = por %p87, %p88
      %s91 = sadd.s32 %s90, 1
      %p94 = scmp.eq.s32.totalorder %s30, 1
      %p95 = scmp.ne.s32.totalorder %s90, %s92
      %p96 = scmp.eq.s32.totalorder %s30, 0
      %p97 = por %p95, %p96
      %p98 = scmp.ne.s32.totalorder %s90, %s92
      %p99 = scmp.eq.s32.totalorder %s35, 1
      %p100 = por %p98, %p99
      %p101 = scmp.ne.s32.totalorder %s92, %s93
      %p102 = scmp.eq.s32.totalorder %s35, 0
      %p103 = por %p101, %p102
      %p104 = scmp.ne.s32.totalorder %s92, %s93
      %p105 = scmp.eq.s32.totalorder %s36, 1
      %p106 = por %p104, %p105
      %p108 = scmp.ne.s32.totalorder %s93, %s107
      %p109 = scmp.eq.s32.totalorder %s36, 0
      %p110 = por %p108, %p109
      %s112 = sadd.s32 %s111, 1
      %p115 = scmp.eq.s32.totalorder %s30, 1
      %p116 = scmp.ne.s32.totalorder %s111, %s113
      %p117 = scmp.eq.s32.totalorder %s30, 0
      %p118 = por %p116, %p117
      %p119 = scmp.ne.s32.totalorder %s111, %s113
      %p120 = scmp.eq.s32.totalorder %s35, 1
      %p121 = por %p119, %p120
      %p122 = scmp.ne.s32.totalorder %s113, %s114
      %p123 = scmp.eq.s32.totalorder %s35, 0
      %p124 = por %p122, %p123
      %p125 = scmp.ne.s32.totalorder %s113, %s114
      %p126 = scmp.eq.s32.totalorder %s36, 1
      %p127 = por %p125, %p126
      %p129 = scmp.ne.s32.totalorder %s114, %s128
      %p130 = scmp.eq.s32.totalorder %s36, 0
      %p131 = por %p129, %p130
      %s133 = sadd.s32 %s132, 1
      %p136 = scmp.eq.s32.totalorder %s30, 1
      %p137 = scmp.ne.s32.totalorder %s132, %s134
      %p138 = scmp.eq.s32.totalorder %s30, 0
      %p139 = por %p137, %p138
      %p140 = scmp.ne.s32.totalorder %s132, %s134
      %p141 = scmp.eq.s32.totalorder %s35, 1
      %p142 = por %p140, %p141
      %p143 = scmp.ne.s32.totalorder %s134, %s135
      %p144 = scmp.eq.s32.totalorder %s35, 0
      %p145 = por %p143, %p144
      %p146 = scmp.ne.s32.totalorder %s134, %s135
      %p147 = scmp.eq.s32.totalorder %s36, 1
      %p148 = por %p146, %p147
      %p150 = scmp.ne.s32.totalorder %s135, %s149
      %p151 = scmp.eq.s32.totalorder %s36, 0
      %p152 = por %p150, %p151
      %s154 = sadd.s32 %s153, 1
      %p157 = scmp.eq.s32.totalorder %s30, 1
      %p158 = scmp.ne.s32.totalorder %s153, %s155
      %p159 = scmp.eq.s32.totalorder %s30, 0
      %p160 = por %p158, %p159
      %p161 = scmp.ne.s32.totalorder %s153, %s155
      %p162 = scmp.eq.s32.totalorder %s35, 1
      %p163 = por %p161, %p162
      %p164 = scmp.ne.s32.totalorder %s155, %s156
      %p165 = scmp.eq.s32.totalorder %s35, 0
      %p166 = por %p164, %p165
      %p167 = scmp.ne.s32.totalorder %s155, %s156
      %p168 = scmp.eq.s32.totalorder %s36, 1
      %p169 = por %p167, %p168
      %p171 = scmp.ne.s32.totalorder %s156, %s170
      %p172 = scmp.eq.s32.totalorder %s36, 0
      %p173 = por %p171, %p172
      %s175 = sadd.s32 %s174, 1
      %p178 = scmp.eq.s32.totalorder %s30, 1
      %p179 = scmp.ne.s32.totalorder %s174, %s176
      %p180 = scmp.eq.s32.totalorder %s30, 0
      %p181 = por %p179, %p180
      %p182 = scmp.ne.s32.totalorder %s174, %s176
      %p183 = scmp.eq.s32.totalorder %s35, 1
      %p184 = por %p182, %p183
      %p185 = scmp.ne.s32.totalorder %s176, %s177
      %p186 = scmp.eq.s32.totalorder %s35, 0
      %p187 = por %p185, %p186
      %p188 = scmp.ne.s32.totalorder %s176, %s177
      %p189 = scmp.eq.s32.totalorder %s36, 1
      %p190 = por %p188, %p189
      %p192 = scmp.ne.s32.totalorder %s177, %s191
      %p193 = scmp.eq.s32.totalorder %s36, 0
      %p194 = por %p192, %p193
      %s196 = sadd.s32 %s195, 1
      %p199 = scmp.eq.s32.totalorder %s30, 1
      %p200 = scmp.ne.s32.totalorder %s195, %s197
      %p201 = scmp.eq.s32.totalorder %s30, 0
      %p202 = por %p200, %p201
      %p203 = scmp.ne.s32.totalorder %s195, %s197
      %p204 = scmp.eq.s32.totalorder %s35, 1
      %p205 = por %p203, %p204
      %p206 = scmp.ne.s32.totalorder %s197, %s198
      %p207 = scmp.eq.s32.totalorder %s35, 0
      %p208 = por %p206, %p207
      %p209 = scmp.ne.s32.totalorder %s197, %s198
      %p210 = scmp.eq.s32.totalorder %s36, 1
      %p211 = por %p209, %p210
      %p213 = scmp.ne.s32.totalorder %s198, %s212
      %p214 = scmp.eq.s32.totalorder %s36, 0
      %p215 = por %p213, %p214
      %s217 = sadd.s32 %s216, 1
      %p220 = scmp.eq.s32.totalorder %s30, 1
      %p221 = scmp.ne.s32.totalorder %s216, %s218
      %p222 = scmp.eq.s32.totalorder %s30, 0
      %p223 = por %p221, %p222
      %p224 = scmp.ne.s32.totalorder %s216, %s218
      %p225 = scmp.eq.s32.totalorder %s35, 1
      %p226 = por %p224, %p225
      %p227 = scmp.ne.s32.totalorder %s218, %s219
      %p228 = scmp.eq.s32.totalorder %s35, 0
      %p229 = por %p227, %p228
      %p230 = scmp.ne.s32.totalorder %s218, %s219
      %p231 = scmp.eq.s32.totalorder %s36, 1
      %p232 = por %p230, %p231
      %p234 = scmp.ne.s32.totalorder %s219, %s233
      %p235 = scmp.eq.s32.totalorder %s36, 0
      %p236 = por %p234, %p235
      %s238 = sadd.s32 %s237, 1
      %p241 = scmp.eq.s32.totalorder %s30, 1
      %p242 = scmp.ne.s32.totalorder %s237, %s239
      %p243 = scmp.eq.s32.totalorder %s30, 0
      %p244 = por %p242, %p243
      %p245 = scmp.ne.s32.totalorder %s237, %s239
      %p246 = scmp.eq.s32.totalorder %s35, 1
      %p247 = por %p245, %p246
      %p248 = scmp.ne.s32.totalorder %s239, %s240
      %p249 = scmp.eq.s32.totalorder %s35, 0
      %p250 = por %p248, %p249
      %p251 = scmp.ne.s32.totalorder %s239, %s240
      %p252 = scmp.eq.s32.totalorder %s36, 1
      %p253 = por %p251, %p252
      %p255 = scmp.ne.s32.totalorder %s240, %s254
      %p256 = scmp.eq.s32.totalorder %s36, 0
      %p257 = por %p255, %p256
      %s259 = sadd.s32 %s258, 1
      %p262 = scmp.eq.s32.totalorder %s30, 1
      %p263 = scmp.ne.s32.totalorder %s258, %s260
      %p264 = scmp.eq.s32.totalorder %s30, 0
      %p265 = por %p263, %p264
      %p266 = scmp.ne.s32.totalorder %s258, %s260
      %p267 = scmp.eq.s32.totalorder %s35, 1
      %p268 = por %p266, %p267
      %p269 = scmp.ne.s32.totalorder %s260, %s261
      %p270 = scmp.eq.s32.totalorder %s35, 0
      %p271 = por %p269, %p270
      %p272 = scmp.ne.s32.totalorder %s260, %s261
      %p273 = scmp.eq.s32.totalorder %s36, 1
      %p274 = por %p272, %p273
      %p276 = scmp.ne.s32.totalorder %s261, %s275
      %p277 = scmp.eq.s32.totalorder %s36, 0
      %p278 = por %p276, %p277
      %s280 = sadd.s32 %s279, 1
      %p283 = scmp.eq.s32.totalorder %s30, 1
      %p284 = scmp.ne.s32.totalorder %s279, %s281
      %p285 = scmp.eq.s32.totalorder %s30, 0
      %p286 = por %p284, %p285
      %p287 = scmp.ne.s32.totalorder %s279, %s281
      %p288 = scmp.eq.s32.totalorder %s35, 1
      %p289 = por %p287, %p288
      %p290 = scmp.ne.s32.totalorder %s281, %s282
      %p291 = scmp.eq.s32.totalorder %s35, 0
      %p292 = por %p290, %p291
      %p293 = scmp.ne.s32.totalorder %s281, %s282
      %p294 = scmp.eq.s32.totalorder %s36, 1
      %p295 = por %p293, %p294
      %p297 = scmp.ne.s32.totalorder %s282, %s296
      %p298 = scmp.eq.s32.totalorder %s36, 0
      %p299 = por %p297, %p298
      %s301 = sadd.s32 %s300, 1
      %p304 = scmp.eq.s32.totalorder %s30, 1
      %p305 = scmp.ne.s32.totalorder %s300, %s302
      %p306 = scmp.eq.s32.totalorder %s30, 0
      %p307 = por %p305, %p306
      %p308 = scmp.ne.s32.totalorder %s300, %s302
      %p309 = scmp.eq.s32.totalorder %s35, 1
      %p310 = por %p308, %p309
      %p311 = scmp.ne.s32.totalorder %s302, %s303
      %p312 = scmp.eq.s32.totalorder %s35, 0
      %p313 = por %p311, %p312
      %p314 = scmp.ne.s32.totalorder %s302, %s303
      %p315 = scmp.eq.s32.totalorder %s36, 1
      %p316 = por %p314, %p315
      %p318 = scmp.ne.s32.totalorder %s303, %s317
      %p319 = scmp.eq.s32.totalorder %s36, 0
      %p320 = por %p318, %p319
      %s322 = sadd.s32 %s321, 1
      %p325 = scmp.eq.s32.totalorder %s30, 1
      %p326 = scmp.ne.s32.totalorder %s321, %s323
      %p327 = scmp.eq.s32.totalorder %s30, 0
      %p328 = por %p326, %p327
      %p329 = scmp.ne.s32.totalorder %s321, %s323
      %p330 = scmp.eq.s32.totalorder %s35, 1
      %p331 = por %p329, %p330
      %p332 = scmp.ne.s32.totalorder %s323, %s324
      %p333 = scmp.eq.s32.totalorder %s35, 0
      %p334 = por %p332, %p333
      %p335 = scmp.ne.s32.totalorder %s323, %s324
      %p336 = scmp.eq.s32.totalorder %s36, 1
      %p337 = por %p335, %p336
      %p339 = scmp.ne.s32.totalorder %s324, %s338
      %p340 = scmp.eq.s32.totalorder %s36, 0
      %p341 = por %p339, %p340
      %s343 = sadd.s32 %s342, 1
      %p346 = scmp.eq.s32.totalorder %s30, 1
      %p347 = scmp.ne.s32.totalorder %s342, %s344
      %p348 = scmp.eq.s32.totalorder %s30, 0
      %p349 = por %p347, %p348
      %p350 = scmp.ne.s32.totalorder %s342, %s344
      %p351 = scmp.eq.s32.totalorder %s35, 1
      %p352 = por %p350, %p351
      %p353 = scmp.ne.s32.totalorder %s344, %s345
      %p354 = scmp.eq.s32.totalorder %s35, 0
      %p355 = por %p353, %p354
      %p356 = scmp.ne.s32.totalorder %s344, %s345
      %p357 = scmp.eq.s32.totalorder %s36, 1
      %p358 = por %p356, %p357
      %p360 = scmp.ne.s32.totalorder %s345, %s359
      %p361 = scmp.eq.s32.totalorder %s36, 0
      %p362 = por %p360, %p361
      %s364 = sadd.s32 %s363, 1
      %p367 = scmp.eq.s32.totalorder %s30, 1
      %p368 = scmp.ne.s32.totalorder %s363, %s365
      %p369 = scmp.eq.s32.totalorder %s30, 0
      %p370 = por %p368, %p369
      %p371 = scmp.ne.s32.totalorder %s363, %s365
      %p372 = scmp.eq.s32.totalorder %s35, 1
      %p373 = por %p371, %p372
      %p374 = scmp.ne.s32.totalorder %s365, %s366
      %p375 = scmp.eq.s32.totalorder %s35, 0
      %p376 = por %p374, %p375
      %p377 = scmp.ne.s32.totalorder %s365, %s366
      %p378 = scmp.eq.s32.totalorder %s36, 1
      %p379 = por %p377, %p378
      %p381 = scmp.ne.s32.totalorder %s366, %s380
      %p382 = scmp.eq.s32.totalorder %s36, 0
      %p383 = por %p381, %p382
      %s385 = sadd.s32 %s384, 1
      %p388 = scmp.eq.s32.totalorder %s30, 1
      %p389 = scmp.ne.s32.totalorder %s384, %s386
      %p390 = scmp.eq.s32.totalorder %s30, 0
      %p391 = por %p389, %p390
      %p392 = scmp.ne.s32.totalorder %s384, %s386
      %p393 = scmp.eq.s32.totalorder %s35, 1
      %p394 = por %p392, %p393
      %p395 = scmp.ne.s32.totalorder %s386, %s387
      %p396 = scmp.eq.s32.totalorder %s35, 0
      %p397 = por %p395, %p396
      %p398 = scmp.ne.s32.totalorder %s386, %s387
      %p399 = scmp.eq.s32.totalorder %s36, 1
      %p400 = por %p398, %p399
      %p402 = scmp.ne.s32.totalorder %s387, %s401
      %p403 = scmp.eq.s32.totalorder %s36, 0
      %p404 = por %p402, %p403
      %s406 = sadd.s32 %s405, 1
      %p409 = scmp.eq.s32.totalorder %s30, 1
      %p410 = scmp.ne.s32.totalorder %s405, %s407
      %p411 = scmp.eq.s32.totalorder %s30, 0
      %p412 = por %p410, %p411
      %p413 = scmp.ne.s32.totalorder %s405, %s407
      %p414 = scmp.eq.s32.totalorder %s35, 1
      %p415 = por %p413, %p414
      %p416 = scmp.ne.s32.totalorder %s407, %s408
      %p417 = scmp.eq.s32.totalorder %s35, 0
      %p418 = por %p416, %p417
      %p419 = scmp.ne.s32.totalorder %s407, %s408
      %p420 = scmp.eq.s32.totalorder %s36, 1
      %p421 = por %p419, %p420
      %p423 = scmp.ne.s32.totalorder %s408, %s422
      %p424 = scmp.eq.s32.totalorder %s36, 0
      %p425 = por %p423, %p424
      %s426 = ssub.s32 %s30, %s37
      %p427 = scmp.eq.s32.totalorder %s426, 0
      %s429 = sadd.s32 %s428, 1
      %s430 = scalar_select %p427, %s428, %s429
      %p433 = pneg %p427
      %p434 = scmp.eq.s32.totalorder %s30, 1
      %p435 = por %p433, %p434
      %p436 = scmp.ne.s32.totalorder %s428, %s431
      %p437 = scmp.eq.s32.totalorder %s30, 0
      %p438 = por %p436, %p437
      %p439 = scmp.ne.s32.totalorder %s428, %s431
      %p440 = scmp.eq.s32.totalorder %s35, 1
      %p441 = por %p439, %p440
      %p442 = scmp.ne.s32.totalorder %s431, %s432
      %p443 = scmp.eq.s32.totalorder %s35, 0
      %p444 = por %p442, %p443
      %p445 = scmp.ne.s32.totalorder %s431, %s432
      %p446 = scmp.eq.s32.totalorder %s36, 1
      %p447 = por %p445, %p446
      %p449 = scmp.ne.s32.totalorder %s432, %s448
      %p450 = scmp.eq.s32.totalorder %s36, 0
      %p451 = por %p449, %p450
      %p452 = scmp.le.s32.totalorder 1, %s30
      %p453 = scmp.lt.s32.totalorder %s30, 3
      %p454 = pnand %p452, %p453
      %p455 = pneg %p454
      // Predicated region
      $region9: #{tpu_custom_call.1} parent=5 // pred_check
        _
      $region10: #{tpu_custom_call.1} parent=5 // pred_check_branch
        %457 = sbr.rel (%p454) target = $region12
      $region11: #{tpu_custom_call.1} parent=5 // pred_region
        %s458 = ssub.s32 %s30, 1
        // Predicated region
        $region13: #{tpu_custom_call.1} parent=11 // pred_check
          %p459 = pneg %p103
        $region14: #{tpu_custom_call.1} parent=11 // pred_check_branch
          %461 = sbr.rel (%p459) target = $region16
        $region15: #{tpu_custom_call.1} parent=11 // pred_region
          _
        $region16: #{tpu_custom_call.1} parent=11 // pred_fallthru
          _
        // Predicated region
        $region17: #{tpu_custom_call.1} parent=11 // pred_check
          %p462 = pneg %p124
        $region18: #{tpu_custom_call.1} parent=11 // pred_check_branch
          %464 = sbr.rel (%p462) target = $region20
        $region19: #{tpu_custom_call.1} parent=11 // pred_region
          %466 = vsyncadd [#allocation3], 0
          %s468 = sshll.u32 %s3, 4
          %s469 = int_to_ptr.hbm [resolvable:$true] %s468
          %s470 = sshll.u32 [#allocation2], 4
          %s471 = int_to_ptr.vmem [resolvable:$true] %s470
          %473 = dma.hbm_to_vmem [thread:$0]  %s469, 16, %s471, [#allocation3]
        $region20: #{tpu_custom_call.1} parent=11 // pred_fallthru
          _
        // Predicated region
        $region21: #{tpu_custom_call.1} parent=11 // pred_check
          %p474 = pneg %p145
        $region22: #{tpu_custom_call.1} parent=11 // pred_check_branch
          %476 = sbr.rel (%p474) target = $region24
        $region23: #{tpu_custom_call.1} parent=11 // pred_region
          _
        $region24: #{tpu_custom_call.1} parent=11 // pred_fallthru
          _
        // Predicated region
        $region25: #{tpu_custom_call.1} parent=11 // pred_check
          %p477 = pneg %p166
        $region26: #{tpu_custom_call.1} parent=11 // pred_check_branch
          %479 = sbr.rel (%p477) target = $region28
        $region27: #{tpu_custom_call.1} parent=11 // pred_region
          _
        $region28: #{tpu_custom_call.1} parent=11 // pred_fallthru
          _
        // Predicated region
        $region29: #{tpu_custom_call.1} parent=11 // pred_check
          %p480 = pneg %p187
        $region30: #{tpu_custom_call.1} parent=11 // pred_check_branch
          %482 = sbr.rel (%p480) target = $region32
        $region31: #{tpu_custom_call.1} parent=11 // pred_region
          _
        $region32: #{tpu_custom_call.1} parent=11 // pred_fallthru
          _
        // Predicated region
        $region33: #{tpu_custom_call.1} parent=11 // pred_check
          %p483 = pneg %p208
        $region34: #{tpu_custom_call.1} parent=11 // pred_check_branch
          %485 = sbr.rel (%p483) target = $region36
        $region35: #{tpu_custom_call.1} parent=11 // pred_region
          _
        $region36: #{tpu_custom_call.1} parent=11 // pred_fallthru
          _
        // Predicated region
        $region37: #{tpu_custom_call.1} parent=11 // pred_check
          %p486 = pneg %p229
        $region38: #{tpu_custom_call.1} parent=11 // pred_check_branch
          %488 = sbr.rel (%p486) target = $region40
        $region39: #{tpu_custom_call.1} parent=11 // pred_region
          %490 = vsyncadd [#allocation6], 0
          %s491 = sshll.u32 %s8, 4
          %s492 = int_to_ptr.hbm [resolvable:$true] %s491
          %s493 = sshll.u32 [#allocation5], 4
          %s494 = int_to_ptr.vmem [resolvable:$true] %s493
          %499 = dma.hbm_to_vmem [thread:$0]  %s492, 512, %s494, [#allocation6], 128, 128, 8
        $region40: #{tpu_custom_call.1} parent=11 // pred_fallthru
          _
        // Predicated region
        $region41: #{tpu_custom_call.1} parent=11 // pred_check
          %p500 = pneg %p250
        $region42: #{tpu_custom_call.1} parent=11 // pred_check_branch
          %502 = sbr.rel (%p500) target = $region44
        $region43: #{tpu_custom_call.1} parent=11 // pred_region
          _
        $region44: #{tpu_custom_call.1} parent=11 // pred_fallthru
          _
        // Predicated region
        $region45: #{tpu_custom_call.1} parent=11 // pred_check
          %p503 = pneg %p271
        $region46: #{tpu_custom_call.1} parent=11 // pred_check_branch
          %505 = sbr.rel (%p503) target = $region48
        $region47: #{tpu_custom_call.1} parent=11 // pred_region
          %507 = vsyncadd [#allocation6], 0
          %s508 = sshll.u32 %s10, 4
          %s509 = int_to_ptr.hbm [resolvable:$true] %s508
          %s510 = sshll.u32 [#allocation7], 4
          %s511 = int_to_ptr.vmem [resolvable:$true] %s510
          %516 = dma.hbm_to_vmem [thread:$0]  %s509, 512, %s511, [#allocation6], 128, 128, 8
        $region48: #{tpu_custom_call.1} parent=11 // pred_fallthru
          _
        // Predicated region
        $region49: #{tpu_custom_call.1} parent=11 // pred_check
          %p517 = pneg %p292
        $region50: #{tpu_custom_call.1} parent=11 // pred_check_branch
          %519 = sbr.rel (%p517) target = $region52
        $region51: #{tpu_custom_call.1} parent=11 // pred_region
          _
        $region52: #{tpu_custom_call.1} parent=11 // pred_fallthru
          _
        // Predicated region
        $region53: #{tpu_custom_call.1} parent=11 // pred_check
          %p520 = pneg %p313
        $region54: #{tpu_custom_call.1} parent=11 // pred_check_branch
          %522 = sbr.rel (%p520) target = $region56
        $region55: #{tpu_custom_call.1} parent=11 // pred_region
          %524 = vsyncadd [#allocation9], 0
          %s525 = sshll.u32 %s12, 4
          %s526 = int_to_ptr.hbm [resolvable:$true] %s525
          %s527 = sshll.u32 [#allocation8], 4
          %s528 = int_to_ptr.vmem [resolvable:$true] %s527
          %533 = dma.hbm_to_vmem [thread:$0]  %s526, 512, %s528, [#allocation9], 128, 128, 8
        $region56: #{tpu_custom_call.1} parent=11 // pred_fallthru
          _
        // Predicated region
        $region57: #{tpu_custom_call.1} parent=11 // pred_check
          %p534 = pneg %p334
        $region58: #{tpu_custom_call.1} parent=11 // pred_check_branch
          %536 = sbr.rel (%p534) target = $region60
        $region59: #{tpu_custom_call.1} parent=11 // pred_region
          _
        $region60: #{tpu_custom_call.1} parent=11 // pred_fallthru
          _
        // Predicated region
        $region61: #{tpu_custom_call.1} parent=11 // pred_check
          %p537 = pneg %p355
        $region62: #{tpu_custom_call.1} parent=11 // pred_check_branch
          %539 = sbr.rel (%p537) target = $region64
        $region63: #{tpu_custom_call.1} parent=11 // pred_region
          %541 = vsyncadd [#allocation9], 0
          %s542 = sshll.u32 %s14, 4
          %s543 = int_to_ptr.hbm [resolvable:$true] %s542
          %s544 = sshll.u32 [#allocation10], 4
          %s545 = int_to_ptr.vmem [resolvable:$true] %s544
          %550 = dma.hbm_to_vmem [thread:$0]  %s543, 512, %s545, [#allocation9], 128, 128, 8
        $region64: #{tpu_custom_call.1} parent=11 // pred_fallthru
          _
        // Predicated region
        $region65: #{tpu_custom_call.1} parent=11 // pred_check
          %p551 = pneg %p376
        $region66: #{tpu_custom_call.1} parent=11 // pred_check_branch
          %553 = sbr.rel (%p551) target = $region68
        $region67: #{tpu_custom_call.1} parent=11 // pred_region
          _
        $region68: #{tpu_custom_call.1} parent=11 // pred_fallthru
          _
        // Predicated region
        $region69: #{tpu_custom_call.1} parent=11 // pred_check
          %p554 = pneg %p397
        $region70: #{tpu_custom_call.1} parent=11 // pred_check_branch
          %556 = sbr.rel (%p554) target = $region72
        $region71: #{tpu_custom_call.1} parent=11 // pred_region
          _
        $region72: #{tpu_custom_call.1} parent=11 // pred_fallthru
          _
        // Predicated region
        $region73: #{tpu_custom_call.1} parent=11 // pred_check
          %p557 = pneg %p418
        $region74: #{tpu_custom_call.1} parent=11 // pred_check_branch
          %559 = sbr.rel (%p557) target = $region76
        $region75: #{tpu_custom_call.1} parent=11 // pred_region
          _
        $region76: #{tpu_custom_call.1} parent=11 // pred_fallthru
          _
      $region12: #{tpu_custom_call.1} parent=5 // pred_fallthru
        _
      %p560 = scmp.lt.s32.totalorder %s30, 2
      // Predicated region
      $region77: #{tpu_custom_call.1} parent=5 // pred_check
        %p561 = pneg %p560
      $region78: #{tpu_custom_call.1} parent=5 // pred_check_branch
        %563 = sbr.rel (%p561) target = $region80
      $region79: #{tpu_custom_call.1} parent=5 // pred_region
        // Predicated region
        $region81: #{tpu_custom_call.1} parent=79 // pred_check
          %p564 = pneg %p50
        $region82: #{tpu_custom_call.1} parent=79 // pred_check_branch
          %566 = sbr.rel (%p564) target = $region84
        $region83: #{tpu_custom_call.1} parent=79 // pred_region
          %s567 = smul.u32 2, %s30
          %p568 = scmp.lt.s32.totalorder %s567, 3
          %s569 = scalar_select %p568, %s567, 3
          %s570 = smul.addr %s569, 8
          %s571 = scalar_lea.vmem %s0, %s570
          %s572 = smul.u32 2, %s30
        $region84: #{tpu_custom_call.1} parent=79 // pred_fallthru
          _
        // Predicated region
        $region85: #{tpu_custom_call.1} parent=79 // pred_check
          %p573 = pneg %p76
        $region86: #{tpu_custom_call.1} parent=79 // pred_check_branch
          %575 = sbr.rel (%p573) target = $region88
        $region87: #{tpu_custom_call.1} parent=79 // pred_region
          %s576 = smul.u32 2, %s30
          %p577 = scmp.lt.s32.totalorder %s576, 3
          %s578 = scalar_select %p577, %s576, 3
          %s579 = smul.addr %s578, 8
          %s580 = scalar_lea.vmem %s1, %s579
          %s581 = smul.u32 2, %s30
        $region88: #{tpu_custom_call.1} parent=79 // pred_fallthru
          _
      $region80: #{tpu_custom_call.1} parent=5 // pred_fallthru
        _
      %p582 = scmp.le.s32.totalorder 1, %s30
      %p583 = scmp.lt.s32.totalorder %s30, 3
      %p584 = pnand %p582, %p583
      %p585 = pneg %p584
      // Predicated region
      $region89: #{tpu_custom_call.1} parent=5 // pred_check
        _
      $region90: #{tpu_custom_call.1} parent=5 // pred_check_branch
        %587 = sbr.rel (%p584) target = $region92
      $region91: #{tpu_custom_call.1} parent=5 // pred_region
        %s588 = ssub.s32 %s30, 1
        // Predicated region
        $region93: #{tpu_custom_call.1} parent=91 // pred_check
          %p589 = pneg %p124
        $region94: #{tpu_custom_call.1} parent=91 // pred_check_branch
          %591 = sbr.rel (%p589) target = $region96
        $region95: #{tpu_custom_call.1} parent=91 // pred_region
          %593 = dma.done [#allocation3], 16
        $region96: #{tpu_custom_call.1} parent=91 // pred_fallthru
          _
        // Predicated region
        $region97: #{tpu_custom_call.1} parent=91 // pred_check
          %p594 = pneg %p229
        $region98: #{tpu_custom_call.1} parent=91 // pred_check_branch
          %596 = sbr.rel (%p594) target = $region100
        $region99: #{tpu_custom_call.1} parent=91 // pred_region
          %598 = dma.done [#allocation6], 512
        $region100: #{tpu_custom_call.1} parent=91 // pred_fallthru
          _
        // Predicated region
        $region101: #{tpu_custom_call.1} parent=91 // pred_check
          %p599 = pneg %p271
        $region102: #{tpu_custom_call.1} parent=91 // pred_check_branch
          %601 = sbr.rel (%p599) target = $region104
        $region103: #{tpu_custom_call.1} parent=91 // pred_region
          %603 = dma.done [#allocation6], 512
        $region104: #{tpu_custom_call.1} parent=91 // pred_fallthru
          _
        // Predicated region
        $region105: #{tpu_custom_call.1} parent=91 // pred_check
          %p604 = pneg %p313
        $region106: #{tpu_custom_call.1} parent=91 // pred_check_branch
          %606 = sbr.rel (%p604) target = $region108
        $region107: #{tpu_custom_call.1} parent=91 // pred_region
          %608 = dma.done [#allocation9], 512
        $region108: #{tpu_custom_call.1} parent=91 // pred_fallthru
          _
        // Predicated region
        $region109: #{tpu_custom_call.1} parent=91 // pred_check
          %p609 = pneg %p355
        $region110: #{tpu_custom_call.1} parent=91 // pred_check_branch
          %611 = sbr.rel (%p609) target = $region112
        $region111: #{tpu_custom_call.1} parent=91 // pred_region
          %613 = dma.done [#allocation9], 512
        $region112: #{tpu_custom_call.1} parent=91 // pred_fallthru
          _
        %s614 = smul.u32 2, %s35
        %p615 = scmp.lt.s32.totalorder %s614, 3
        %s616 = scalar_select %p615, %s614, 3
        %s617 = smul.addr %s616, 8
        %s618 = scalar_lea.vmem %s0, %s617
        %p619 = pneg %p56
        %p620 = pneg %p53
        %s621 = smul.u32 2, %s35
        %p622 = scmp.lt.s32.totalorder %s621, 3
        %s623 = scalar_select %p622, %s621, 3
        %s624 = smul.addr %s623, 8
        %s625 = scalar_lea.vmem %s1, %s624
        %p626 = pneg %p82
        %p627 = pneg %p79
        %p628 = pneg %p103
        %p629 = pneg %p100
        %p630 = pneg %p124
        %p631 = pneg %p121
        %p632 = pneg %p145
        %p633 = pneg %p142
        %p634 = pneg %p166
        %p635 = pneg %p163
        %p636 = pneg %p187
        %p637 = pneg %p184
        %p638 = pneg %p208
        %p639 = pneg %p205
        %p640 = pneg %p229
        %p641 = pneg %p226
        %p642 = pneg %p250
        %p643 = pneg %p247
        %p644 = pneg %p271
        %p645 = pneg %p268
        %p646 = pneg %p292
        %p647 = pneg %p289
        %p648 = pneg %p313
        %p649 = pneg %p310
        %p650 = pneg %p334
        %p651 = pneg %p331
        %p652 = pneg %p355
        %p653 = pneg %p352
        %p654 = pneg %p376
        %p655 = pneg %p373
        %p656 = pneg %p397
        %p657 = pneg %p394
        %p658 = pneg %p418
        %p659 = pneg %p415
        %p660 = pneg %p444
        %p661 = pneg %p441
        %s662 = sand.u32 %s431, 1
        %s663 = scalar_lea.sflag [#allocation4], %s662
        %s664 = sand.u32 %s431, 1
        %s665 = smul.addr %s664, 16
        %s666 = scalar_lea.vmem [#allocation11], %s665
        %s667 = smul.u32 2, %s35
        %p668 = scmp.lt.s32.totalorder %s667, 3
        %s669 = scalar_select %p668, %s667, 3
        %s670 = smul.addr %s669, 8
        %s671 = scalar_lea.vmem %s0, %s670
        %s672 = smul.u32 2, %s35
        %s673 = smul.u32 2, %s35
        %p674 = scmp.lt.s32.totalorder %s673, 3
        %s675 = scalar_select %p674, %s673, 3
        %s676 = smul.addr %s675, 8
        %s677 = scalar_lea.vmem %s1, %s676
        %s678 = smul.u32 2, %s35
        %s679 = smul.u32 2, %s35
        %v680 = vld [vmem:[%s671] sm:$0xff]
        %v681 = vld [vmem:[%s671 + $0x8] sm:$0xff]
        %v682 = vld [vmem:[%s677] sm:$0xff]
        %v683 = vld [vmem:[%s677 + $0x8] sm:$0xff]
        %vm684 = vcmp.ne.f32.partialorder %v682, 0.0
        %vm685 = vcmp.ne.f32.partialorder %v683, 0.0
        %v686 = vsel %vm684, 0.0, -1e+09
        %v687 = vsel %vm685, 0.0, -1e+09
        %v688 = vld [vmem:[%s2] sm:$0x1]
        %v689 = vld [vmem:[#allocation2] sm:$0x1]
        %vm690 = vcmask 261120
        %v691 = vsel %vm690, %v680, 0.0
        %692 = vadd.xlane.f32.xlu0 %v691
        %v693 = vpop.xlane.xlu0 %692
        %v694 = vsel %vm690, %v681, 0.0
        %695 = vadd.xlane.f32.xlu0 %v694
        %v696 = vpop.xlane.xlu0 %695
        %v697 = vrcp.pop 32.0
        %v698 = vmul.f32 32.0, %v697
        %v699 = vsub.f32 1.0, %v698
        %v700 = vmul.f32 %v697, %v699
        %v701 = vadd.f32 %v697, %v700
        %vm702 = vweird.f32 %v697
        %v703 = vsel %vm702, %v697, %v701
        %v704 = vmul.f32 %v693, %v703
        %v705 = vmul.f32 %v696, %v703
        %v706 = vsub.f32 %v680, %v704
        %v707 = vsub.f32 %v681, %v705
        %v708 = vmul.f32 %v706, %v706
        %v709 = vmul.f32 %v707, %v707
        %v710 = vsel %vm690, %v708, 0.0
        %711 = vadd.xlane.f32.xlu0 %v710
        %v712 = vpop.xlane.xlu0 %711
        %v713 = vsel %vm690, %v709, 0.0
        %714 = vadd.xlane.f32.xlu0 %v713
        %v715 = vpop.xlane.xlu0 %714
        %v716 = vmul.f32 %v712, %v703
        %v717 = vmul.f32 %v715, %v703
        %v718 = vadd.f32 %v716, 1e-06
        %v719 = vadd.f32 %v717, 1e-06
        %v720 = vrsqrt.pop %v718
        %v721 = vmul.f32 %v720, %v718
        %v722 = vmul.f32 %v721, %v720
        %v723 = vmul.f32 0.5, %v722
        %v724 = vsub.f32 1.5, %v723
        %v725 = vmul.f32 %v720, %v724
        %vm726 = vweird.f32 %v718
        %vm727 = vweird.f32 %v720
        %vm728 = vmor %vm726, %vm727
        %v729 = vsel %vm728, %v720, %v725
        %v730 = vrsqrt.pop %v719
        %v731 = vmul.f32 %v730, %v719
        %v732 = vmul.f32 %v731, %v730
        %v733 = vmul.f32 0.5, %v732
        %v734 = vsub.f32 1.5, %v733
        %v735 = vmul.f32 %v730, %v734
        %vm736 = vweird.f32 %v719
        %vm737 = vweird.f32 %v730
        %vm738 = vmor %vm736, %vm737
        %v739 = vsel %vm738, %v730, %v735
        %v740 = vmul.f32 %v706, %v729
        %v741 = vmul.f32 %v707, %v739
        %v743 = vperm.slane %v688, 0
        %v745 = vmul.f32 %v740, %v743
        %v746 = vmul.f32 %v741, %v743
        %v748 = vperm.slane %v689, 0
        %v750 = vadd.f32 %v745, %v748
        %v751 = vadd.f32 %v746, %v748
        %v752 = vld [vmem:[%s6] sm:$0xff]
        %v753 = vld [vmem:[%s6 + $0x8] sm:$0xff]
        %v754 = vld [vmem:[%s6 + $0x10] sm:$0xff]
        %v755 = vld [vmem:[%s6 + $0x18] sm:$0xff]
        %v756 = vld [vmem:[%s7] sm:$0x1]
        %v758 = vperm.slane %v756, 0
        %v761 = vsel %vm690, %v750, 0
        %v764 = vsel %vm690, %v751, 0
        %766 = vmatpush.msra.mxu0 0.0
        %767 = vmatpush.msra.mxu0 0.0
        %768 = vmatpush.msra.mxu0 0.0
        %769 = vmatpush.msra.mxu0 0.0
        %770 = vmatpush.msra.mxu0 0.0
        %771 = vmatpush.msra.mxu0 0.0
        %772 = vmatpush.msra.mxu0 0.0
        %773 = vmatpush.msra.mxu0 0.0
        %774 = vmatpush.msra.mxu0 0.0
        %775 = vmatpush.msra.mxu0 0.0
        %776 = vmatpush.msra.mxu0 0.0
        %777 = vmatpush.msra.mxu0 0.0
        %778 = vmatpush.msra.mxu0 %v755
        %779 = vmatpush.msra.mxu0 %v754
        %780 = vmatpush.msra.mxu0 %v753
        %781 = vmatpush.msra.mxu0 %v752
        %782 = vmatmul.f32.gmra.mxu0 %v761
        %v783 = vpop.f32.mrf.mxu0
        %v784 = vadd.f32 %v758, %v783
        %785 = vmatmul.f32.gmra.mxu0 %v764
        %v786 = vpop.f32.mrf.mxu0
        %v787 = vadd.f32 %v758, %v786
        %788 = vdwg.mxu0
        %v789 = vld [vmem:[#allocation5] sm:$0xff]
        %v790 = vld [vmem:[#allocation5 + $0x8] sm:$0xff]
        %v791 = vld [vmem:[#allocation5 + $0x10] sm:$0xff]
        %v792 = vld [vmem:[#allocation5 + $0x18] sm:$0xff]
        %v793 = vld [vmem:[%s9] sm:$0x1]
        %v795 = vperm.slane %v793, 0
        %797 = vmatpush.msra.mxu0 0.0
        %798 = vmatpush.msra.mxu0 0.0
        %799 = vmatpush.msra.mxu0 0.0
        %800 = vmatpush.msra.mxu0 0.0
        %801 = vmatpush.msra.mxu0 0.0
        %802 = vmatpush.msra.mxu0 0.0
        %803 = vmatpush.msra.mxu0 0.0
        %804 = vmatpush.msra.mxu0 0.0
        %805 = vmatpush.msra.mxu0 0.0
        %806 = vmatpush.msra.mxu0 0.0
        %807 = vmatpush.msra.mxu0 0.0
        %808 = vmatpush.msra.mxu0 0.0
        %809 = vmatpush.msra.mxu0 %v792
        %810 = vmatpush.msra.mxu0 %v791
        %811 = vmatpush.msra.mxu0 %v790
        %812 = vmatpush.msra.mxu0 %v789
        %813 = vmatmul.f32.gmra.mxu0 %v761
        %v814 = vpop.f32.mrf.mxu0
        %v815 = vadd.f32 %v795, %v814
        %816 = vmatmul.f32.gmra.mxu0 %v764
        %v817 = vpop.f32.mrf.mxu0
        %v818 = vadd.f32 %v795, %v817
        %819 = vdwg.mxu0
        %v820 = vld [vmem:[#allocation7] sm:$0xff]
        %v821 = vld [vmem:[#allocation7 + $0x8] sm:$0xff]
        %v822 = vld [vmem:[#allocation7 + $0x10] sm:$0xff]
        %v823 = vld [vmem:[#allocation7 + $0x18] sm:$0xff]
        %v824 = vld [vmem:[%s11] sm:$0x1]
        %v826 = vperm.slane %v824, 0
        %828 = vmatpush.msra.mxu0 0.0
        %829 = vmatpush.msra.mxu0 0.0
        %830 = vmatpush.msra.mxu0 0.0
        %831 = vmatpush.msra.mxu0 0.0
        %832 = vmatpush.msra.mxu0 0.0
        %833 = vmatpush.msra.mxu0 0.0
        %834 = vmatpush.msra.mxu0 0.0
        %835 = vmatpush.msra.mxu0 0.0
        %836 = vmatpush.msra.mxu0 0.0
        %837 = vmatpush.msra.mxu0 0.0
        %838 = vmatpush.msra.mxu0 0.0
        %839 = vmatpush.msra.mxu0 0.0
        %840 = vmatpush.msra.mxu0 %v823
        %841 = vmatpush.msra.mxu0 %v822
        %842 = vmatpush.msra.mxu0 %v821
        %843 = vmatpush.msra.mxu0 %v820
        %844 = vmatmul.f32.gmra.mxu0 %v761
        %v845 = vpop.f32.mrf.mxu0
        %v846 = vadd.f32 %v826, %v845
        %847 = vmatmul.f32.gmra.mxu0 %v764
        %v848 = vpop.f32.mrf.mxu0
        %v849 = vadd.f32 %v826, %v848
        %850 = vdwg.mxu0
        %vm851 = vcmask 64512
        %v853 = vsel %vm851, %v784, 0
        %v856 = vsel %vm851, %v815, 0
        %858 = vmatpush.xpose.msra.mxu0 0.0
        %859 = vmatpush.xpose.msra.mxu0 0.0
        %860 = vmatpush.xpose.msra.mxu0 0.0
        %861 = vmatpush.xpose.msra.mxu0 0.0
        %862 = vmatpush.xpose.msra.mxu0 0.0
        %863 = vmatpush.xpose.msra.mxu0 0.0
        %864 = vmatpush.xpose.msra.mxu0 0.0
        %865 = vmatpush.xpose.msra.mxu0 0.0
        %866 = vmatpush.xpose.msra.mxu0 0.0
        %867 = vmatpush.xpose.msra.mxu0 0.0
        %868 = vmatpush.xpose.msra.mxu0 0.0
        %869 = vmatpush.xpose.msra.mxu0 0.0
        %870 = vmatpush.xpose.msra.mxu0 0.0
        %871 = vmatpush.xpose.msra.mxu0 0.0
        %872 = vmatpush.xpose.msra.mxu0 0.0
        %873 = vmatpush.xpose.msra.mxu0 %v856
        %874 = vmatmul.f32.gmra.mxu0 %v853
        %v875 = vpop.f32.mrf.mxu0
        %v876 = vadd.f32 0.0, %v875
        %877 = vdwg.mxu0
        %v879 = vsel %vm851, %v787, 0
        %v882 = vsel %vm851, %v818, 0
        %884 = vmatpush.xpose.msra.mxu0 0.0
        %885 = vmatpush.xpose.msra.mxu0 0.0
        %886 = vmatpush.xpose.msra.mxu0 0.0
        %887 = vmatpush.xpose.msra.mxu0 0.0
        %888 = vmatpush.xpose.msra.mxu0 0.0
        %889 = vmatpush.xpose.msra.mxu0 0.0
        %890 = vmatpush.xpose.msra.mxu0 0.0
        %891 = vmatpush.xpose.msra.mxu0 0.0
        %892 = vmatpush.xpose.msra.mxu0 0.0
        %893 = vmatpush.xpose.msra.mxu0 0.0
        %894 = vmatpush.xpose.msra.mxu0 0.0
        %895 = vmatpush.xpose.msra.mxu0 0.0
        %896 = vmatpush.xpose.msra.mxu0 0.0
        %897 = vmatpush.xpose.msra.mxu0 0.0
        %898 = vmatpush.xpose.msra.mxu0 0.0
        %899 = vmatpush.xpose.msra.mxu0 %v882
        %900 = vmatmul.f32.gmra.mxu0 %v879
        %v901 = vpop.f32.mrf.mxu0
        %v902 = vadd.f32 0.0, %v901
        %903 = vdwg.mxu0
        %v904 = vmul.f32 %v876, 0.35355338
        %v905 = vmul.f32 %v902, 0.35355338
        %v906 = vadd.f32 %v904, %v686
        %v907 = vadd.f32 %v905, %v687
        %v908 = vsel %vm851, %v906, -inf
        %909 = vmax.xlane.f32.xlu0 %v908
        %v910 = vpop.xlane.xlu0 %909
        %v911 = vsel %vm851, %v907, -inf
        %912 = vmax.xlane.f32.xlu0 %v911
        %v913 = vpop.xlane.xlu0 %912
        %v914 = vsub.f32 %v906, %v910
        %v915 = vsub.f32 %v907, %v913
        %v916 = vmul.f32 %v914, 1.442695
        %v917 = vpow.pop %v916
        %v918 = vmul.f32 %v915, 1.442695
        %v919 = vpow.pop %v918
        %v920 = vsel %vm851, %v917, 0.0
        %921 = vadd.xlane.f32.xlu0 %v920
        %v922 = vpop.xlane.xlu0 %921
        %v923 = vsel %vm851, %v919, 0.0
        %924 = vadd.xlane.f32.xlu0 %v923
        %v925 = vpop.xlane.xlu0 %924
        %v926 = vrcp.pop %v922
        %v927 = vrcp.pop %v925
        %v928 = vmul.f32 %v917, %v926
        %v929 = vmul.f32 %v919, %v927
        %v931 = vsel %vm851, %v928, 0
        %933 = vmatpush.msra.mxu0 0.0
        %934 = vmatpush.msra.mxu0 0.0
        %935 = vmatpush.msra.mxu0 0.0
        %936 = vmatpush.msra.mxu0 0.0
        %937 = vmatpush.msra.mxu0 0.0
        %938 = vmatpush.msra.mxu0 0.0
        %939 = vmatpush.msra.mxu0 0.0
        %940 = vmatpush.msra.mxu0 0.0
        %941 = vmatpush.msra.mxu0 0.0
        %942 = vmatpush.msra.mxu0 0.0
        %943 = vmatpush.msra.mxu0 0.0
        %944 = vmatpush.msra.mxu0 0.0
        %945 = vmatpush.msra.mxu0 0.0
        %946 = vmatpush.msra.mxu0 0.0
        %947 = vmatpush.msra.mxu0 0.0
        %948 = vmatpush.msra.mxu0 %v846
        %949 = vmatmul.f32.gmra.mxu0 %v931
        %v950 = vpop.f32.mrf.mxu0
        %v951 = vadd.f32 0.0, %v950
        %952 = vdwg.mxu0
        %v954 = vsel %vm851, %v929, 0
        %956 = vmatpush.msra.mxu0 0.0
        %957 = vmatpush.msra.mxu0 0.0
        %958 = vmatpush.msra.mxu0 0.0
        %959 = vmatpush.msra.mxu0 0.0
        %960 = vmatpush.msra.mxu0 0.0
        %961 = vmatpush.msra.mxu0 0.0
        %962 = vmatpush.msra.mxu0 0.0
        %963 = vmatpush.msra.mxu0 0.0
        %964 = vmatpush.msra.mxu0 0.0
        %965 = vmatpush.msra.mxu0 0.0
        %966 = vmatpush.msra.mxu0 0.0
        %967 = vmatpush.msra.mxu0 0.0
        %968 = vmatpush.msra.mxu0 0.0
        %969 = vmatpush.msra.mxu0 0.0
        %970 = vmatpush.msra.mxu0 0.0
        %971 = vmatpush.msra.mxu0 %v849
        %972 = vmatmul.f32.gmra.mxu0 %v954
        %v973 = vpop.f32.mrf.mxu0
        %v974 = vadd.f32 0.0, %v973
        %975 = vdwg.mxu0
        %v976 = vld [vmem:[#allocation8] sm:$0xff]
        %977 = vrot.lane.b32.xlu0 %v784, 120
        %v978 = vpop.permute.xlu0 %977
        %979 = vrot.lane.b32.xlu0 %v815, 120
        %v980 = vpop.permute.xlu0 %979
        %v981 = vsel %vm851, %v978, 0
        %v983 = vsel %vm851, %v980, 0
        %985 = vmatpush.xpose.msra.mxu0 0.0
        %986 = vmatpush.xpose.msra.mxu0 0.0
        %987 = vmatpush.xpose.msra.mxu0 0.0
        %988 = vmatpush.xpose.msra.mxu0 0.0
        %989 = vmatpush.xpose.msra.mxu0 0.0
        %990 = vmatpush.xpose.msra.mxu0 0.0
        %991 = vmatpush.xpose.msra.mxu0 0.0
        %992 = vmatpush.xpose.msra.mxu0 0.0
        %993 = vmatpush.xpose.msra.mxu0 0.0
        %994 = vmatpush.xpose.msra.mxu0 0.0
        %995 = vmatpush.xpose.msra.mxu0 0.0
        %996 = vmatpush.xpose.msra.mxu0 0.0
        %997 = vmatpush.xpose.msra.mxu0 0.0
        %998 = vmatpush.xpose.msra.mxu0 0.0
        %999 = vmatpush.xpose.msra.mxu0 0.0
        %1000 = vmatpush.xpose.msra.mxu0 %v983
        %1001 = vmatmul.f32.gmra.mxu0 %v981
        %v1002 = vpop.f32.mrf.mxu0
        %v1003 = vadd.f32 0.0, %v1002
        %1004 = vdwg.mxu0
        %1005 = vrot.lane.b32.xlu0 %v787, 120
        %v1006 = vpop.permute.xlu0 %1005
        %1007 = vrot.lane.b32.xlu0 %v818, 120
        %v1008 = vpop.permute.xlu0 %1007
        %v1009 = vsel %vm851, %v1006, 0
        %v1011 = vsel %vm851, %v1008, 0
        %1013 = vmatpush.xpose.msra.mxu0 0.0
        %1014 = vmatpush.xpose.msra.mxu0 0.0
        %1015 = vmatpush.xpose.msra.mxu0 0.0
        %1016 = vmatpush.xpose.msra.mxu0 0.0
        %1017 = vmatpush.xpose.msra.mxu0 0.0
        %1018 = vmatpush.xpose.msra.mxu0 0.0
        %1019 = vmatpush.xpose.msra.mxu0 0.0
        %1020 = vmatpush.xpose.msra.mxu0 0.0
        %1021 = vmatpush.xpose.msra.mxu0 0.0
        %1022 = vmatpush.xpose.msra.mxu0 0.0
        %1023 = vmatpush.xpose.msra.mxu0 0.0
        %1024 = vmatpush.xpose.msra.mxu0 0.0
        %1025 = vmatpush.xpose.msra.mxu0 0.0
        %1026 = vmatpush.xpose.msra.mxu0 0.0
        %1027 = vmatpush.xpose.msra.mxu0 0.0
        %1028 = vmatpush.xpose.msra.mxu0 %v1011
        %1029 = vmatmul.f32.gmra.mxu0 %v1009
        %v1030 = vpop.f32.mrf.mxu0
        %v1031 = vadd.f32 0.0, %v1030
        %1032 = vdwg.mxu0
        %v1033 = vmul.f32 %v1003, 0.35355338
        %v1034 = vmul.f32 %v1031, 0.35355338
        %v1035 = vadd.f32 %v1033, %v686
        %v1036 = vadd.f32 %v1034, %v687
        %v1037 = vsel %vm851, %v1035, -inf
        %1038 = vmax.xlane.f32.xlu0 %v1037
        %v1039 = vpop.xlane.xlu0 %1038
        %v1040 = vsel %vm851, %v1036, -inf
        %1041 = vmax.xlane.f32.xlu0 %v1040
        %v1042 = vpop.xlane.xlu0 %1041
        %v1043 = vsub.f32 %v1035, %v1039
        %v1044 = vsub.f32 %v1036, %v1042
        %v1045 = vmul.f32 %v1043, 1.442695
        %v1046 = vpow.pop %v1045
        %v1047 = vmul.f32 %v1044, 1.442695
        %v1048 = vpow.pop %v1047
        %v1049 = vsel %vm851, %v1046, 0.0
        %1050 = vadd.xlane.f32.xlu0 %v1049
        %v1051 = vpop.xlane.xlu0 %1050
        %v1052 = vsel %vm851, %v1048, 0.0
        %1053 = vadd.xlane.f32.xlu0 %v1052
        %v1054 = vpop.xlane.xlu0 %1053
        %v1055 = vrcp.pop %v1051
        %v1056 = vrcp.pop %v1054
        %v1057 = vmul.f32 %v1046, %v1055
        %v1058 = vmul.f32 %v1048, %v1056
        %1060 = vrot.lane.b32.xlu0 %v846, 120
        %v1061 = vpop.permute.xlu0 %1060
        %v1064 = vsel %vm851, %v1057, 0
        %1066 = vmatpush.msra.mxu0 0.0
        %1067 = vmatpush.msra.mxu0 0.0
        %1068 = vmatpush.msra.mxu0 0.0
        %1069 = vmatpush.msra.mxu0 0.0
        %1070 = vmatpush.msra.mxu0 0.0
        %1071 = vmatpush.msra.mxu0 0.0
        %1072 = vmatpush.msra.mxu0 0.0
        %1073 = vmatpush.msra.mxu0 0.0
        %1074 = vmatpush.msra.mxu0 0.0
        %1075 = vmatpush.msra.mxu0 0.0
        %1076 = vmatpush.msra.mxu0 0.0
        %1077 = vmatpush.msra.mxu0 0.0
        %1078 = vmatpush.msra.mxu0 0.0
        %1079 = vmatpush.msra.mxu0 0.0
        %1080 = vmatpush.msra.mxu0 0.0
        %1081 = vmatpush.msra.mxu0 %v1061
        %1082 = vmatmul.f32.gmra.mxu0 %v1064
        %v1083 = vpop.f32.mrf.mxu0
        %v1084 = vadd.f32 0.0, %v1083
        %1085 = vdwg.mxu0
        %1087 = vrot.lane.b32.xlu0 %v849, 120
        %v1088 = vpop.permute.xlu0 %1087
        %v1091 = vsel %vm851, %v1058, 0
        %1093 = vmatpush.msra.mxu0 0.0
        %1094 = vmatpush.msra.mxu0 0.0
        %1095 = vmatpush.msra.mxu0 0.0
        %1096 = vmatpush.msra.mxu0 0.0
        %1097 = vmatpush.msra.mxu0 0.0
        %1098 = vmatpush.msra.mxu0 0.0
        %1099 = vmatpush.msra.mxu0 0.0
        %1100 = vmatpush.msra.mxu0 0.0
        %1101 = vmatpush.msra.mxu0 0.0
        %1102 = vmatpush.msra.mxu0 0.0
        %1103 = vmatpush.msra.mxu0 0.0
        %1104 = vmatpush.msra.mxu0 0.0
        %1105 = vmatpush.msra.mxu0 0.0
        %1106 = vmatpush.msra.mxu0 0.0
        %1107 = vmatpush.msra.mxu0 0.0
        %1108 = vmatpush.msra.mxu0 %v1088
        %1109 = vmatmul.f32.gmra.mxu0 %v1091
        %v1110 = vpop.f32.mrf.mxu0
        %v1111 = vadd.f32 0.0, %v1110
        %1112 = vdwg.mxu0
        %v1113 = vld [vmem:[#allocation8 + $0x8] sm:$0xff]
        %v1115 = vsel %vm851, %v1084, 0
        %v1118 = vsel %vm851, %v1111, 0
        %1120 = vmatpush.msra.mxu0 0.0
        %1121 = vmatpush.msra.mxu0 0.0
        %1122 = vmatpush.msra.mxu0 0.0
        %1123 = vmatpush.msra.mxu0 0.0
        %1124 = vmatpush.msra.mxu0 0.0
        %1125 = vmatpush.msra.mxu0 0.0
        %1126 = vmatpush.msra.mxu0 0.0
        %1127 = vmatpush.msra.mxu0 0.0
        %1128 = vmatpush.msra.mxu0 0.0
        %1129 = vmatpush.msra.mxu0 0.0
        %1130 = vmatpush.msra.mxu0 0.0
        %1131 = vmatpush.msra.mxu0 0.0
        %1132 = vmatpush.msra.mxu0 0.0
        %1133 = vmatpush.msra.mxu0 0.0
        %1134 = vmatpush.msra.mxu0 0.0
        %1135 = vmatpush.msra.mxu0 %v1113
        %1136 = vmatmul.f32.gmra.mxu0 %v1115
        %v1137 = vpop.f32.mrf.mxu0
        %v1138 = vadd.f32 0.0, %v1137
        %1139 = vmatmul.f32.gmra.mxu0 %v1118
        %v1140 = vpop.f32.mrf.mxu0
        %v1141 = vadd.f32 0.0, %v1140
        %1142 = vdwg.mxu0
        %v1144 = vsel %vm851, %v951, 0
        %v1147 = vsel %vm851, %v974, 0
        %1149 = vmatpush.msra.mxu0 0.0
        %1150 = vmatpush.msra.mxu0 0.0
        %1151 = vmatpush.msra.mxu0 0.0
        %1152 = vmatpush.msra.mxu0 0.0
        %1153 = vmatpush.msra.mxu0 0.0
        %1154 = vmatpush.msra.mxu0 0.0
        %1155 = vmatpush.msra.mxu0 0.0
        %1156 = vmatpush.msra.mxu0 0.0
        %1157 = vmatpush.msra.mxu0 0.0
        %1158 = vmatpush.msra.mxu0 0.0
        %1159 = vmatpush.msra.mxu0 0.0
        %1160 = vmatpush.msra.mxu0 0.0
        %1161 = vmatpush.msra.mxu0 0.0
        %1162 = vmatpush.msra.mxu0 0.0
        %1163 = vmatpush.msra.mxu0 0.0
        %1164 = vmatpush.msra.mxu0 %v976
        %1165 = vmatmul.f32.gmra.mxu0 %v1144
        %v1166 = vpop.f32.mrf.mxu0
        %v1167 = vadd.f32 %v1138, %v1166
        %1168 = vmatmul.f32.gmra.mxu0 %v1147
        %v1169 = vpop.f32.mrf.mxu0
        %v1170 = vadd.f32 %v1141, %v1169
        %1171 = vdwg.mxu0
        %1172 = vrot.lane.b32.xlu0 %v784, 112
        %v1173 = vpop.permute.xlu0 %1172
        %1174 = vrot.lane.b32.xlu0 %v815, 112
        %v1175 = vpop.permute.xlu0 %1174
        %v1176 = vsel %vm851, %v1173, 0
        %v1178 = vsel %vm851, %v1175, 0
        %1180 = vmatpush.xpose.msra.mxu0 0.0
        %1181 = vmatpush.xpose.msra.mxu0 0.0
        %1182 = vmatpush.xpose.msra.mxu0 0.0
        %1183 = vmatpush.xpose.msra.mxu0 0.0
        %1184 = vmatpush.xpose.msra.mxu0 0.0
        %1185 = vmatpush.xpose.msra.mxu0 0.0
        %1186 = vmatpush.xpose.msra.mxu0 0.0
        %1187 = vmatpush.xpose.msra.mxu0 0.0
        %1188 = vmatpush.xpose.msra.mxu0 0.0
        %1189 = vmatpush.xpose.msra.mxu0 0.0
        %1190 = vmatpush.xpose.msra.mxu0 0.0
        %1191 = vmatpush.xpose.msra.mxu0 0.0
        %1192 = vmatpush.xpose.msra.mxu0 0.0
        %1193 = vmatpush.xpose.msra.mxu0 0.0
        %1194 = vmatpush.xpose.msra.mxu0 0.0
        %1195 = vmatpush.xpose.msra.mxu0 %v1178
        %1196 = vmatmul.f32.gmra.mxu0 %v1176
        %v1197 = vpop.f32.mrf.mxu0
        %v1198 = vadd.f32 0.0, %v1197
        %1199 = vdwg.mxu0
        %1200 = vrot.lane.b32.xlu0 %v787, 112
        %v1201 = vpop.permute.xlu0 %1200
        %1202 = vrot.lane.b32.xlu0 %v818, 112
        %v1203 = vpop.permute.xlu0 %1202
        %v1204 = vsel %vm851, %v1201, 0
        %v1206 = vsel %vm851, %v1203, 0
        %1208 = vmatpush.xpose.msra.mxu0 0.0
        %1209 = vmatpush.xpose.msra.mxu0 0.0
        %1210 = vmatpush.xpose.msra.mxu0 0.0
        %1211 = vmatpush.xpose.msra.mxu0 0.0
        %1212 = vmatpush.xpose.msra.mxu0 0.0
        %1213 = vmatpush.xpose.msra.mxu0 0.0
        %1214 = vmatpush.xpose.msra.mxu0 0.0
        %1215 = vmatpush.xpose.msra.mxu0 0.0
        %1216 = vmatpush.xpose.msra.mxu0 0.0
        %1217 = vmatpush.xpose.msra.mxu0 0.0
        %1218 = vmatpush.xpose.msra.mxu0 0.0
        %1219 = vmatpush.xpose.msra.mxu0 0.0
        %1220 = vmatpush.xpose.msra.mxu0 0.0
        %1221 = vmatpush.xpose.msra.mxu0 0.0
        %1222 = vmatpush.xpose.msra.mxu0 0.0
        %1223 = vmatpush.xpose.msra.mxu0 %v1206
        %1224 = vmatmul.f32.gmra.mxu0 %v1204
        %v1225 = vpop.f32.mrf.mxu0
        %v1226 = vadd.f32 0.0, %v1225
        %1227 = vdwg.mxu0
        %v1228 = vmul.f32 %v1198, 0.35355338
        %v1229 = vmul.f32 %v1226, 0.35355338
        %v1230 = vadd.f32 %v1228, %v686
        %v1231 = vadd.f32 %v1229, %v687
        %v1232 = vsel %vm851, %v1230, -inf
        %1233 = vmax.xlane.f32.xlu0 %v1232
        %v1234 = vpop.xlane.xlu0 %1233
        %v1235 = vsel %vm851, %v1231, -inf
        %1236 = vmax.xlane.f32.xlu0 %v1235
        %v1237 = vpop.xlane.xlu0 %1236
        %v1238 = vsub.f32 %v1230, %v1234
        %v1239 = vsub.f32 %v1231, %v1237
        %v1240 = vmul.f32 %v1238, 1.442695
        %v1241 = vpow.pop %v1240
        %v1242 = vmul.f32 %v1239, 1.442695
        %v1243 = vpow.pop %v1242
        %v1244 = vsel %vm851, %v1241, 0.0
        %1245 = vadd.xlane.f32.xlu0 %v1244
        %v1246 = vpop.xlane.xlu0 %1245
        %v1247 = vsel %vm851, %v1243, 0.0
        %1248 = vadd.xlane.f32.xlu0 %v1247
        %v1249 = vpop.xlane.xlu0 %1248
        %v1250 = vrcp.pop %v1246
        %v1251 = vrcp.pop %v1249
        %v1252 = vmul.f32 %v1241, %v1250
        %v1253 = vmul.f32 %v1243, %v1251
        %1254 = vrot.lane.b32.xlu0 %v846, 112
        %v1255 = vpop.permute.xlu0 %1254
        %v1258 = vsel %vm851, %v1252, 0
        %1260 = vmatpush.msra.mxu0 0.0
        %1261 = vmatpush.msra.mxu0 0.0
        %1262 = vmatpush.msra.mxu0 0.0
        %1263 = vmatpush.msra.mxu0 0.0
        %1264 = vmatpush.msra.mxu0 0.0
        %1265 = vmatpush.msra.mxu0 0.0
        %1266 = vmatpush.msra.mxu0 0.0
        %1267 = vmatpush.msra.mxu0 0.0
        %1268 = vmatpush.msra.mxu0 0.0
        %1269 = vmatpush.msra.mxu0 0.0
        %1270 = vmatpush.msra.mxu0 0.0
        %1271 = vmatpush.msra.mxu0 0.0
        %1272 = vmatpush.msra.mxu0 0.0
        %1273 = vmatpush.msra.mxu0 0.0
        %1274 = vmatpush.msra.mxu0 0.0
        %1275 = vmatpush.msra.mxu0 %v1255
        %1276 = vmatmul.f32.gmra.mxu0 %v1258
        %v1277 = vpop.f32.mrf.mxu0
        %v1278 = vadd.f32 0.0, %v1277
        %1279 = vdwg.mxu0
        %1280 = vrot.lane.b32.xlu0 %v849, 112
        %v1281 = vpop.permute.xlu0 %1280
        %v1284 = vsel %vm851, %v1253, 0
        %1286 = vmatpush.msra.mxu0 0.0
        %1287 = vmatpush.msra.mxu0 0.0
        %1288 = vmatpush.msra.mxu0 0.0
        %1289 = vmatpush.msra.mxu0 0.0
        %1290 = vmatpush.msra.mxu0 0.0
        %1291 = vmatpush.msra.mxu0 0.0
        %1292 = vmatpush.msra.mxu0 0.0
        %1293 = vmatpush.msra.mxu0 0.0
        %1294 = vmatpush.msra.mxu0 0.0
        %1295 = vmatpush.msra.mxu0 0.0
        %1296 = vmatpush.msra.mxu0 0.0
        %1297 = vmatpush.msra.mxu0 0.0
        %1298 = vmatpush.msra.mxu0 0.0
        %1299 = vmatpush.msra.mxu0 0.0
        %1300 = vmatpush.msra.mxu0 0.0
        %1301 = vmatpush.msra.mxu0 %v1281
        %1302 = vmatmul.f32.gmra.mxu0 %v1284
        %v1303 = vpop.f32.mrf.mxu0
        %v1304 = vadd.f32 0.0, %v1303
        %1305 = vdwg.mxu0
        %v1306 = vld [vmem:[#allocation8 + $0x10] sm:$0xff]
        %v1308 = vsel %vm851, %v1278, 0
        %v1311 = vsel %vm851, %v1304, 0
        %1313 = vmatpush.msra.mxu0 0.0
        %1314 = vmatpush.msra.mxu0 0.0
        %1315 = vmatpush.msra.mxu0 0.0
        %1316 = vmatpush.msra.mxu0 0.0
        %1317 = vmatpush.msra.mxu0 0.0
        %1318 = vmatpush.msra.mxu0 0.0
        %1319 = vmatpush.msra.mxu0 0.0
        %1320 = vmatpush.msra.mxu0 0.0
        %1321 = vmatpush.msra.mxu0 0.0
        %1322 = vmatpush.msra.mxu0 0.0
        %1323 = vmatpush.msra.mxu0 0.0
        %1324 = vmatpush.msra.mxu0 0.0
        %1325 = vmatpush.msra.mxu0 0.0
        %1326 = vmatpush.msra.mxu0 0.0
        %1327 = vmatpush.msra.mxu0 0.0
        %1328 = vmatpush.msra.mxu0 %v1306
        %1329 = vmatmul.f32.gmra.mxu0 %v1308
        %v1330 = vpop.f32.mrf.mxu0
        %v1331 = vadd.f32 0.0, %v1330
        %1332 = vmatmul.f32.gmra.mxu0 %v1311
        %v1333 = vpop.f32.mrf.mxu0
        %v1334 = vadd.f32 0.0, %v1333
        %1335 = vdwg.mxu0
        %v1336 = vadd.f32 %v1167, %v1331
        %v1337 = vadd.f32 %v1170, %v1334
        %1338 = vrot.lane.b32.xlu0 %v784, 104
        %v1339 = vpop.permute.xlu0 %1338
        %1340 = vrot.lane.b32.xlu0 %v815, 104
        %v1341 = vpop.permute.xlu0 %1340
        %v1342 = vsel %vm851, %v1339, 0
        %v1344 = vsel %vm851, %v1341, 0
        %1346 = vmatpush.xpose.msra.mxu0 0.0
        %1347 = vmatpush.xpose.msra.mxu0 0.0
        %1348 = vmatpush.xpose.msra.mxu0 0.0
        %1349 = vmatpush.xpose.msra.mxu0 0.0
        %1350 = vmatpush.xpose.msra.mxu0 0.0
        %1351 = vmatpush.xpose.msra.mxu0 0.0
        %1352 = vmatpush.xpose.msra.mxu0 0.0
        %1353 = vmatpush.xpose.msra.mxu0 0.0
        %1354 = vmatpush.xpose.msra.mxu0 0.0
        %1355 = vmatpush.xpose.msra.mxu0 0.0
        %1356 = vmatpush.xpose.msra.mxu0 0.0
        %1357 = vmatpush.xpose.msra.mxu0 0.0
        %1358 = vmatpush.xpose.msra.mxu0 0.0
        %1359 = vmatpush.xpose.msra.mxu0 0.0
        %1360 = vmatpush.xpose.msra.mxu0 0.0
        %1361 = vmatpush.xpose.msra.mxu0 %v1344
        %1362 = vmatmul.f32.gmra.mxu0 %v1342
        %v1363 = vpop.f32.mrf.mxu0
        %v1364 = vadd.f32 0.0, %v1363
        %1365 = vdwg.mxu0
        %1366 = vrot.lane.b32.xlu0 %v787, 104
        %v1367 = vpop.permute.xlu0 %1366
        %1368 = vrot.lane.b32.xlu0 %v818, 104
        %v1369 = vpop.permute.xlu0 %1368
        %v1370 = vsel %vm851, %v1367, 0
        %v1372 = vsel %vm851, %v1369, 0
        %1374 = vmatpush.xpose.msra.mxu0 0.0
        %1375 = vmatpush.xpose.msra.mxu0 0.0
        %1376 = vmatpush.xpose.msra.mxu0 0.0
        %1377 = vmatpush.xpose.msra.mxu0 0.0
        %1378 = vmatpush.xpose.msra.mxu0 0.0
        %1379 = vmatpush.xpose.msra.mxu0 0.0
        %1380 = vmatpush.xpose.msra.mxu0 0.0
        %1381 = vmatpush.xpose.msra.mxu0 0.0
        %1382 = vmatpush.xpose.msra.mxu0 0.0
        %1383 = vmatpush.xpose.msra.mxu0 0.0
        %1384 = vmatpush.xpose.msra.mxu0 0.0
        %1385 = vmatpush.xpose.msra.mxu0 0.0
        %1386 = vmatpush.xpose.msra.mxu0 0.0
        %1387 = vmatpush.xpose.msra.mxu0 0.0
        %1388 = vmatpush.xpose.msra.mxu0 0.0
        %1389 = vmatpush.xpose.msra.mxu0 %v1372
        %1390 = vmatmul.f32.gmra.mxu0 %v1370
        %v1391 = vpop.f32.mrf.mxu0
        %v1392 = vadd.f32 0.0, %v1391
        %1393 = vdwg.mxu0
        %v1394 = vmul.f32 %v1364, 0.35355338
        %v1395 = vmul.f32 %v1392, 0.35355338
        %v1396 = vadd.f32 %v1394, %v686
        %v1397 = vadd.f32 %v1395, %v687
        %v1398 = vsel %vm851, %v1396, -inf
        %1399 = vmax.xlane.f32.xlu0 %v1398
        %v1400 = vpop.xlane.xlu0 %1399
        %v1401 = vsel %vm851, %v1397, -inf
        %1402 = vmax.xlane.f32.xlu0 %v1401
        %v1403 = vpop.xlane.xlu0 %1402
        %v1404 = vsub.f32 %v1396, %v1400
        %v1405 = vsub.f32 %v1397, %v1403
        %v1406 = vmul.f32 %v1404, 1.442695
        %v1407 = vpow.pop %v1406
        %v1408 = vmul.f32 %v1405, 1.442695
        %v1409 = vpow.pop %v1408
        %v1410 = vsel %vm851, %v1407, 0.0
        %1411 = vadd.xlane.f32.xlu0 %v1410
        %v1412 = vpop.xlane.xlu0 %1411
        %v1413 = vsel %vm851, %v1409, 0.0
        %1414 = vadd.xlane.f32.xlu0 %v1413
        %v1415 = vpop.xlane.xlu0 %1414
        %v1416 = vrcp.pop %v1412
        %v1417 = vrcp.pop %v1415
        %v1418 = vmul.f32 %v1407, %v1416
        %v1419 = vmul.f32 %v1409, %v1417
        %1420 = vrot.lane.b32.xlu0 %v846, 104
        %v1421 = vpop.permute.xlu0 %1420
        %v1424 = vsel %vm851, %v1418, 0
        %1426 = vmatpush.msra.mxu0 0.0
        %1427 = vmatpush.msra.mxu0 0.0
        %1428 = vmatpush.msra.mxu0 0.0
        %1429 = vmatpush.msra.mxu0 0.0
        %1430 = vmatpush.msra.mxu0 0.0
        %1431 = vmatpush.msra.mxu0 0.0
        %1432 = vmatpush.msra.mxu0 0.0
        %1433 = vmatpush.msra.mxu0 0.0
        %1434 = vmatpush.msra.mxu0 0.0
        %1435 = vmatpush.msra.mxu0 0.0
        %1436 = vmatpush.msra.mxu0 0.0
        %1437 = vmatpush.msra.mxu0 0.0
        %1438 = vmatpush.msra.mxu0 0.0
        %1439 = vmatpush.msra.mxu0 0.0
        %1440 = vmatpush.msra.mxu0 0.0
        %1441 = vmatpush.msra.mxu0 %v1421
        %1442 = vmatmul.f32.gmra.mxu0 %v1424
        %v1443 = vpop.f32.mrf.mxu0
        %v1444 = vadd.f32 0.0, %v1443
        %1445 = vdwg.mxu0
        %1446 = vrot.lane.b32.xlu0 %v849, 104
        %v1447 = vpop.permute.xlu0 %1446
        %v1450 = vsel %vm851, %v1419, 0
        %1452 = vmatpush.msra.mxu0 0.0
        %1453 = vmatpush.msra.mxu0 0.0
        %1454 = vmatpush.msra.mxu0 0.0
        %1455 = vmatpush.msra.mxu0 0.0
        %1456 = vmatpush.msra.mxu0 0.0
        %1457 = vmatpush.msra.mxu0 0.0
        %1458 = vmatpush.msra.mxu0 0.0
        %1459 = vmatpush.msra.mxu0 0.0
        %1460 = vmatpush.msra.mxu0 0.0
        %1461 = vmatpush.msra.mxu0 0.0
        %1462 = vmatpush.msra.mxu0 0.0
        %1463 = vmatpush.msra.mxu0 0.0
        %1464 = vmatpush.msra.mxu0 0.0
        %1465 = vmatpush.msra.mxu0 0.0
        %1466 = vmatpush.msra.mxu0 0.0
        %1467 = vmatpush.msra.mxu0 %v1447
        %1468 = vmatmul.f32.gmra.mxu0 %v1450
        %v1469 = vpop.f32.mrf.mxu0
        %v1470 = vadd.f32 0.0, %v1469
        %1471 = vdwg.mxu0
        %v1472 = vld [vmem:[#allocation8 + $0x18] sm:$0xff]
        %v1474 = vsel %vm851, %v1444, 0
        %v1477 = vsel %vm851, %v1470, 0
        %1479 = vmatpush.msra.mxu0 0.0
        %1480 = vmatpush.msra.mxu0 0.0
        %1481 = vmatpush.msra.mxu0 0.0
        %1482 = vmatpush.msra.mxu0 0.0
        %1483 = vmatpush.msra.mxu0 0.0
        %1484 = vmatpush.msra.mxu0 0.0
        %1485 = vmatpush.msra.mxu0 0.0
        %1486 = vmatpush.msra.mxu0 0.0
        %1487 = vmatpush.msra.mxu0 0.0
        %1488 = vmatpush.msra.mxu0 0.0
        %1489 = vmatpush.msra.mxu0 0.0
        %1490 = vmatpush.msra.mxu0 0.0
        %1491 = vmatpush.msra.mxu0 0.0
        %1492 = vmatpush.msra.mxu0 0.0
        %1493 = vmatpush.msra.mxu0 0.0
        %1494 = vmatpush.msra.mxu0 %v1472
        %1495 = vmatmul.f32.gmra.mxu0 %v1474
        %v1496 = vpop.f32.mrf.mxu0
        %v1497 = vadd.f32 0.0, %v1496
        %1498 = vmatmul.f32.gmra.mxu0 %v1477
        %v1499 = vpop.f32.mrf.mxu0
        %v1500 = vadd.f32 0.0, %v1499
        %1501 = vdwg.mxu0
        %v1502 = vadd.f32 %v1336, %v1497
        %v1503 = vadd.f32 %v1337, %v1500
        %v1504 = vadd.f32 %v680, %v1502
        %v1505 = vadd.f32 %v681, %v1503
        %v1506 = vld [vmem:[%s13] sm:$0x1]
        %v1508 = vperm.slane %v1506, 0
        %v1510 = vadd.f32 %v1504, %v1508
        %v1511 = vadd.f32 %v1505, %v1508
        %v1512 = vld [vmem:[%s4] sm:$0x1]
        %v1513 = vld [vmem:[%s5] sm:$0x1]
        %v1514 = vsel %vm690, %v1510, 0.0
        %1515 = vadd.xlane.f32.xlu0 %v1514
        %v1516 = vpop.xlane.xlu0 %1515
        %v1517 = vsel %vm690, %v1511, 0.0
        %1518 = vadd.xlane.f32.xlu0 %v1517
        %v1519 = vpop.xlane.xlu0 %1518
        %v1520 = vmul.f32 %v1516, %v703
        %v1521 = vmul.f32 %v1519, %v703
        %v1522 = vsub.f32 %v1510, %v1520
        %v1523 = vsub.f32 %v1511, %v1521
        %v1524 = vmul.f32 %v1522, %v1522
        %v1525 = vmul.f32 %v1523, %v1523
        %v1526 = vsel %vm690, %v1524, 0.0
        %1527 = vadd.xlane.f32.xlu0 %v1526
        %v1528 = vpop.xlane.xlu0 %1527
        %v1529 = vsel %vm690, %v1525, 0.0
        %1530 = vadd.xlane.f32.xlu0 %v1529
        %v1531 = vpop.xlane.xlu0 %1530
        %v1532 = vmul.f32 %v1528, %v703
        %v1533 = vmul.f32 %v1531, %v703
        %v1534 = vadd.f32 %v1532, 1e-06
        %v1535 = vadd.f32 %v1533, 1e-06
        %v1536 = vrsqrt.pop %v1534
        %v1537 = vmul.f32 %v1536, %v1534
        %v1538 = vmul.f32 %v1537, %v1536
        %v1539 = vmul.f32 0.5, %v1538
        %v1540 = vsub.f32 1.5, %v1539
        %v1541 = vmul.f32 %v1536, %v1540
        %vm1542 = vweird.f32 %v1534
        %vm1543 = vweird.f32 %v1536
        %vm1544 = vmor %vm1542, %vm1543
        %v1545 = vsel %vm1544, %v1536, %v1541
        %v1546 = vrsqrt.pop %v1535
        %v1547 = vmul.f32 %v1546, %v1535
        %v1548 = vmul.f32 %v1547, %v1546
        %v1549 = vmul.f32 0.5, %v1548
        %v1550 = vsub.f32 1.5, %v1549
        %v1551 = vmul.f32 %v1546, %v1550
        %vm1552 = vweird.f32 %v1535
        %vm1553 = vweird.f32 %v1546
        %vm1554 = vmor %vm1552, %vm1553
        %v1555 = vsel %vm1554, %v1546, %v1551
        %v1556 = vmul.f32 %v1522, %v1545
        %v1557 = vmul.f32 %v1523, %v1555
        %v1559 = vperm.slane %v1512, 0
        %v1561 = vmul.f32 %v1556, %v1559
        %v1562 = vmul.f32 %v1557, %v1559
        %v1564 = vperm.slane %v1513, 0
        %v1566 = vadd.f32 %v1561, %v1564
        %v1567 = vadd.f32 %v1562, %v1564
        %v1568 = vld [vmem:[#allocation10] sm:$0xff]
        %v1569 = vld [vmem:[#allocation10 + $0x8] sm:$0xff]
        %v1570 = vld [vmem:[#allocation10 + $0x10] sm:$0xff]
        %v1571 = vld [vmem:[#allocation10 + $0x18] sm:$0xff]
        %v1572 = vld [vmem:[%s15] sm:$0x1]
        %v1574 = vperm.slane %v1572, 0
        %v1577 = vsel %vm690, %v1566, 0
        %v1580 = vsel %vm690, %v1567, 0
        %1582 = vmatpush.msra.mxu0 0.0
        %1583 = vmatpush.msra.mxu0 0.0
        %1584 = vmatpush.msra.mxu0 0.0
        %1585 = vmatpush.msra.mxu0 0.0
        %1586 = vmatpush.msra.mxu0 0.0
        %1587 = vmatpush.msra.mxu0 0.0
        %1588 = vmatpush.msra.mxu0 0.0
        %1589 = vmatpush.msra.mxu0 0.0
        %1590 = vmatpush.msra.mxu0 0.0
        %1591 = vmatpush.msra.mxu0 0.0
        %1592 = vmatpush.msra.mxu0 0.0
        %1593 = vmatpush.msra.mxu0 0.0
        %1594 = vmatpush.msra.mxu0 %v1571
        %1595 = vmatpush.msra.mxu0 %v1570
        %1596 = vmatpush.msra.mxu0 %v1569
        %1597 = vmatpush.msra.mxu0 %v1568
        %1598 = vmatmul.f32.gmra.mxu0 %v1577
        %v1599 = vpop.f32.mrf.mxu0
        %v1600 = vadd.f32 %v1574, %v1599
        %1601 = vmatmul.f32.gmra.mxu0 %v1580
        %v1602 = vpop.f32.mrf.mxu0
        %v1603 = vadd.f32 %v1574, %v1602
        %1604 = vdwg.mxu0
        %v1605 = vmax.f32 %v1600, 0.0
        %v1606 = vmax.f32 %v1603, 0.0
        %v1607 = vld [vmem:[%s16] sm:$0xff]
        %v1608 = vld [vmem:[%s16 + $0x8] sm:$0xff]
        %v1609 = vld [vmem:[%s16 + $0x10] sm:$0xff]
        %v1610 = vld [vmem:[%s16 + $0x18] sm:$0xff]
        %v1611 = vld [vmem:[%s16 + $0x20] sm:$0xff]
        %v1612 = vld [vmem:[%s16 + $0x28] sm:$0xff]
        %v1613 = vld [vmem:[%s16 + $0x30] sm:$0xff]
        %v1614 = vld [vmem:[%s16 + $0x38] sm:$0xff]
        %v1615 = vld [vmem:[%s17] sm:$0x1]
        %v1617 = vperm.slane %v1615, 0
        %vm1619 = vcmask 523264
        %v1621 = vsel %vm1619, %v1605, 0
        %v1624 = vsel %vm1619, %v1606, 0
        %1626 = vmatpush.msra.mxu0 0.0
        %1627 = vmatpush.msra.mxu0 0.0
        %1628 = vmatpush.msra.mxu0 0.0
        %1629 = vmatpush.msra.mxu0 0.0
        %1630 = vmatpush.msra.mxu0 0.0
        %1631 = vmatpush.msra.mxu0 0.0
        %1632 = vmatpush.msra.mxu0 0.0
        %1633 = vmatpush.msra.mxu0 0.0
        %1634 = vmatpush.msra.mxu0 %v1614
        %1635 = vmatpush.msra.mxu0 %v1613
        %1636 = vmatpush.msra.mxu0 %v1612
        %1637 = vmatpush.msra.mxu0 %v1611
        %1638 = vmatpush.msra.mxu0 %v1610
        %1639 = vmatpush.msra.mxu0 %v1609
        %1640 = vmatpush.msra.mxu0 %v1608
        %1641 = vmatpush.msra.mxu0 %v1607
        %1642 = vmatmul.f32.gmra.mxu0 %v1621
        %v1643 = vpop.f32.mrf.mxu0
        %v1644 = vadd.f32 %v1617, %v1643
        %1645 = vmatmul.f32.gmra.mxu0 %v1624
        %v1646 = vpop.f32.mrf.mxu0
        %v1647 = vadd.f32 %v1617, %v1646
        %1648 = vdwg.mxu0
        %v1649 = vadd.f32 %v1510, %v1644
        %v1650 = vadd.f32 %v1511, %v1647
        %1651 = vst.msk [vmem:[%s666] sm:$0xff] %vm690, %v1649
        %1652 = vst.msk [vmem:[%s666 + $0x8] sm:$0xff] %vm690, %v1650
        %s1653 = sand.u32 %s431, 1
        %s1654 = scalar_lea.sflag [#allocation4], %s1653
        %s1655 = sand.u32 %s431, 1
        %s1656 = smul.addr %s1655, 16
        %s1657 = scalar_lea.vmem [#allocation11], %s1656
        // Predicated region
        $region113: #{tpu_custom_call.1} parent=91 // pred_check
          %p1658 = pneg %p441
        $region114: #{tpu_custom_call.1} parent=91 // pred_check_branch
          %1660 = sbr.rel (%p1658) target = $region116
        $region115: #{tpu_custom_call.1} parent=91 // pred_region
          %s1661 = smul.u32 2, %s35
          %1663 = vsyncadd %s1654, 0
          %s1664 = smul.addr %s1661, 8
          %s1665 = scalar_lea.hbm %s18, %s1664
          %s1666 = sshll.u32 %s1657, 4
          %s1667 = int_to_ptr.vmem [resolvable:$true] %s1666
          %s1668 = sshll.u32 %s1665, 4
          %s1669 = int_to_ptr.hbm [resolvable:$true] %s1668
          %1674 = dma.vmem_to_hbm [thread:$0]  %s1667, 256, %s1669, %s1654, 128, 128, 8
        $region116: #{tpu_custom_call.1} parent=91 // pred_fallthru
          _
      $region92: #{tpu_custom_call.1} parent=5 // pred_fallthru
        _
      %p1675 = scmp.le.s32.totalorder 2, %s30
      // Predicated region
      $region117: #{tpu_custom_call.1} parent=5 // pred_check
        %p1676 = pneg %p1675
      $region118: #{tpu_custom_call.1} parent=5 // pred_check_branch
        %1678 = sbr.rel (%p1676) target = $region120
      $region119: #{tpu_custom_call.1} parent=5 // pred_region
        %s1679 = ssub.s32 %s30, 2
        // Predicated region
        $region121: #{tpu_custom_call.1} parent=119 // pred_check
          %p1680 = pneg %p447
        $region122: #{tpu_custom_call.1} parent=119 // pred_check_branch
          %1682 = sbr.rel (%p1680) target = $region124
        $region123: #{tpu_custom_call.1} parent=119 // pred_region
          %s1683 = sand.u32 %s432, 1
          %s1684 = scalar_lea.sflag [#allocation4], %s1683
          %s1685 = sand.u32 %s432, 1
          %s1686 = smul.addr %s1685, 16
          %s1687 = scalar_lea.vmem [#allocation11], %s1686
          %1689 = dma.done %s1684, 256
        $region124: #{tpu_custom_call.1} parent=119 // pred_fallthru
          _
      $region120: #{tpu_custom_call.1} parent=5 // pred_fallthru
        _
    $region6: #{tpu_custom_call.1} parent=1 // loop_footer
      %s34 = sadd.s32 1, %s30
    $region7: #{tpu_custom_call.1} parent=1 // loop_footer_branch
      %29 = sbr.rel target = $region3
    $region8: #{tpu_custom_call.1} parent=1 // loop_exit
      _
    %1690 = vsyncpa [#allocation3], 1
    %s1691 = scalar_lea.sflag [#allocation3], 1
    %1692 = vsyncpa %s1691, 1
    %1693 = vsyncpa [#allocation6], 1
    %1694 = vsyncpa [#allocation9], 1
    %1695 = vsyncpa [#allocation4], 1
    %s1696 = scalar_lea.sflag [#allocation4], 1
    %1697 = vsyncpa %s1696, 1

</llo_original>
